<compile_context>
chip_gen: v7x
topology: tpu7x:2x2x1
jax: 0.10.0
libtpu: 0.0.40
codegen_flags: <defaults>
</compile_context>

<pallas_src>
import functools

import jax
import jax.numpy as jnp
from jax.experimental import pallas as pl
from jax.experimental.pallas import tpu as pltpu


def _round_up(x, m):
    return (x + m - 1) // m * m


def _pick_tiles(npad):
    """Row tile (tm) / aggregation tile (tk) for the padded node count.

    tm: as large as possible (up to 1024) while keeping >=2 row tiles when the
        padded graph allows it, so the 'parallel' axis shards across v7x's two
        TensorCores.  tk: up to 512.  Both must divide npad (npad % 128 == 0).
    """
    def best(cap, candidates):
        for t in candidates:
            if t <= cap and npad % t == 0:
                return t
        return 128

    tm = best(max(128, min(1024, npad // 2)), (1024, 512, 384, 256, 128))
    tk = best(512, (512, 384, 256, 128))
    return tm, tk


# ----------------------------------------------------------------------------
# Kernel: one SAGEConv layer.
#   grid = (N/tm row tiles [parallel], N/tk aggregation tiles [arbitrary])
#   acc_ref accumulates counts[i,:] @ X (neighbor-feature SUM) in f32 across k;
#   at the last k the row-wise 1/deg scale turns it into the mean, then the
#   fused projection  agg @ W_l + x_i @ W_r + b  (optional ReLU) emits a
#   lane-dense output tile.
# ----------------------------------------------------------------------------
def sage_layer_kernel(a_ref, xk_ref, xi_ref, d_ref, wl_ref, wr_ref, b_ref,
                      o_ref, acc_ref, *, apply_relu):
    k = pl.program_id(1)

    @pl.when(k == 0)
    def _():
        acc_ref[...] = jnp.zeros_like(acc_ref)

    # Neighbor-sum partial: int8 counts [tm, tk] (cast to bf16 in VMEM, so only
    # 1 B/elem crosses HBM) @ X slice [tk, F], f32 accumulation.
    acc_ref[...] += jnp.dot(a_ref[...].astype(jnp.bfloat16), xk_ref[...],
                            preferred_element_type=jnp.float32)

    @pl.when(k == pl.num_programs(1) - 1)
    def _():
        # Mean aggregation: exact f32 1/deg scale (zero in-degree rows have
        # inv_deg == 1 and a zero sum, so they aggregate to 0, PyG semantics).
        agg = (acc_ref[...] * d_ref[...]).astype(xi_ref.dtype)     # [tm, F] bf16
        # Two K=F dots instead of concat([agg, x]) @ [W_l; W_r]: avoids
        # materializing a [tm, 2F] buffer in VMEM.
        out = (jnp.dot(agg, wl_ref[...], preferred_element_type=jnp.float32)
               + jnp.dot(xi_ref[...], wr_ref[...],
                         preferred_element_type=jnp.float32)
               + b_ref[...])
        if apply_relu:
            out = jnp.maximum(out, 0.0)
        o_ref[...] = out.astype(o_ref.dtype)


def sage_layer(a_i8, inv_deg, x_pad, w_l, w_r, b_pad, *, out_dtype, apply_relu,
               tm, tk):
    """One SAGEConv layer on padded, lane-dense operands.

    a_i8:    [Np, Np]  unnormalized edge counts (int8), A[i, j] = #edges j->i
    inv_deg: [Np, 1]   f32 reciprocal in-degree (1.0 for isolated nodes)
    x_pad:   [Np, F]   node features (bf16), F multiple of 128
    w_l:     [F, Fo]   neighbor-path weight (bf16)
    w_r:     [F, Fo]   root-path weight (bf16)
    b_pad:   [1, Fo]   bias (f32)
    """
    npad = a_i8.shape[0]
    f = x_pad.shape[1]
    fo = w_l.shape[1]
    grid = (npad // tm, npad // tk)

    flops = 2 * npad * npad * f + 4 * npad * f * fo
    bytes_accessed = int(
        npad * npad * 1                          # int8 A, each tile read once
        + npad * f * 2 * grid[0]                 # X neighbor slices, re-streamed per row tile
        + npad * f * 2                           # X root slices (one tile per row tile)
        + npad * 4                               # inv_deg
        + 2 * f * fo * 2 + fo * 4                # weights + bias (constant index map -> once)
        + npad * fo * jnp.dtype(out_dtype).itemsize)   # output

    kernel = functools.partial(sage_layer_kernel, apply_relu=apply_relu)

    return pl.pallas_call(
        kernel,
        out_shape=jax.ShapeDtypeStruct((npad, fo), out_dtype),
        grid=grid,
        in_specs=[
            pl.BlockSpec((tm, tk), lambda i, k: (i, k)),   # A (int8 counts) tile
            pl.BlockSpec((tk, f), lambda i, k: (k, 0)),    # X neighbor slice
            pl.BlockSpec((tm, f), lambda i, k: (i, 0)),    # X root slice
            pl.BlockSpec((tm, 1), lambda i, k: (i, 0)),    # 1/deg for this row tile
            pl.BlockSpec((f, fo), lambda i, k: (0, 0)),    # W_l
            pl.BlockSpec((f, fo), lambda i, k: (0, 0)),    # W_r
            pl.BlockSpec((1, fo), lambda i, k: (0, 0)),    # bias
        ],
        out_specs=pl.BlockSpec((tm, fo), lambda i, k: (i, 0)),
        scratch_shapes=[pltpu.VMEM((tm, f), jnp.float32)],
        compiler_params=pltpu.CompilerParams(
            dimension_semantics=("parallel", "arbitrary"),
            # Live footprint at tm=tk=512, F=128 is ~2 MiB; 32 MiB gives ample
            # headroom on every generation (incl. v7x -- its 64 MiB total VMEM
            # is not the binding constraint for this kernel).
            vmem_limit_bytes=32 * 1024 * 1024,
        ),
        cost_estimate=pl.CostEstimate(
            flops=flops, transcendentals=0, bytes_accessed=bytes_accessed),
    )(a_i8, x_pad, x_pad, inv_deg, w_l, w_r, b_pad)


# ----------------------------------------------------------------------------
# Graph operator construction.  For a STATIC graph this should be computed once
# and reused across forward calls (it is O(N^2) wrapper-side work otherwise).
# ----------------------------------------------------------------------------
def build_mean_aggregation_operator(edge_index, num_nodes, npad):
    """Returns (counts int8 [Np,Np], inv_deg f32 [Np,1]).

    counts[i, j] = number of edges j -> i (PyG mean counts duplicates).
    inv_deg[i]   = 1 / max(in_degree(i), 1)   (zero-degree rows aggregate to 0).
    """
    src, dst = edge_index[0], edge_index[1]
    # Counts built directly in a narrow dtype; degrees via an O(E) scatter
    # (no N^2 row-sum, no f32 N^2 intermediate).
    counts = jnp.zeros((npad, npad), jnp.int8).at[dst, src].add(jnp.int8(1))
    deg = jnp.zeros((npad,), jnp.float32).at[dst].add(1.0)
    inv_deg = (1.0 / jnp.maximum(deg, 1.0)).reshape(npad, 1)
    # TODO(synk): counts overflow if a single (src, dst) pair repeats > 127 times;
    # and for genuinely sparse graphs replace this dense O(N^2) operator with a
    # CSR gather-based aggregation (scalar-prefetched row pointers + manual DMAs).
    return counts, inv_deg


# ----------------------------------------------------------------------------
# Wrapper: pad everything to lane/MXU-friendly shapes, run the two layers,
# slice back to the true shape.
# ----------------------------------------------------------------------------
def graphsage_forward(x, edge_index, params):
    """x: [N, Fin] float32, edge_index: [2, E] int32 (row 0 = src, row 1 = dst)."""
    wl1, wr1, b1, wl2, wr2, b2 = params
    n, fin = x.shape
    hid = wl1.shape[1]
    fout = wl2.shape[1]

    npad = _round_up(n, 128)
    tm, tk = _pick_tiles(npad)
    fin_p, hid_p, fout_p = (_round_up(d, 128) for d in (fin, hid, fout))

    a_i8, inv_deg = build_mean_aggregation_operator(edge_index, n, npad)

    x_p = jnp.zeros((npad, fin_p), jnp.bfloat16).at[:n, :fin].set(
        x.astype(jnp.bfloat16))

    # Zero padding keeps the math exact; weights stay separate (two K=F dots in
    # the kernel epilogue, no concat buffer).
    wl1_p = jnp.zeros((fin_p, hid_p), jnp.bfloat16).at[:fin, :hid].set(
        wl1.astype(jnp.bfloat16))
    wr1_p = jnp.zeros((fin_p, hid_p), jnp.bfloat16).at[:fin, :hid].set(
        wr1.astype(jnp.bfloat16))
    b1_p = jnp.zeros((1, hid_p), jnp.float32).at[:, :hid].set(b1)

    wl2_p = jnp.zeros((hid_p, fout_p), jnp.bfloat16).at[:hid, :fout].set(
        wl2.astype(jnp.bfloat16))
    wr2_p = jnp.zeros((hid_p, fout_p), jnp.bfloat16).at[:hid, :fout].set(
        wr2.astype(jnp.bfloat16))
    b2_p = jnp.zeros((1, fout_p), jnp.float32).at[:, :fout].set(b2)

    # Layer 1: SAGEConv(Fin -> H) + ReLU (bf16 hidden activations).
    # Note: padded rows of h1 equal relu(b1) (nonzero) -- harmless, because the
    # padded COLUMNS of the adjacency counts are zero (edges only reference real
    # nodes) and padded output rows are sliced off below.  Do not "optimize"
    # this away without re-checking that invariant.
    h1 = sage_layer(a_i8, inv_deg, x_p, wl1_p, wr1_p, b1_p,
                    out_dtype=jnp.bfloat16, apply_relu=True, tm=tm, tk=tk)
    # Layer 2: SAGEConv(H -> Fout), f32 output.
    out = sage_layer(a_i8, inv_deg, h1, wl2_p, wr2_p, b2_p,
                     out_dtype=jnp.float32, apply_relu=False, tm=tm, tk=tk)
    return out[:n, :fout]


# ----------------------------------------------------------------------------
# Parameter init + pure-JAX reference (f32).
# ----------------------------------------------------------------------------
def init_params(key, input_dim, hidden_dim, output_dim):
    """Deterministic parameter init. Weights stored as [in, out] (x @ W)."""
    ks = jax.random.split(key, 6)
    s1 = 1.0 / jnp.sqrt(input_dim)
    s2 = 1.0 / jnp.sqrt(hidden_dim)
    wl1 = jax.random.uniform(ks[0], (input_dim, hidden_dim), jnp.float32, -s1, s1)
    wr1 = jax.random.uniform(ks[1], (input_dim, hidden_dim), jnp.float32, -s1, s1)
    b1 = jax.random.uniform(ks[2], (1, hidden_dim), jnp.float32, -s1, s1)
    wl2 = jax.random.uniform(ks[3], (hidden_dim, output_dim), jnp.float32, -s2, s2)
    wr2 = jax.random.uniform(ks[4], (hidden_dim, output_dim), jnp.float32, -s2, s2)
    b2 = jax.random.uniform(ks[5], (1, output_dim), jnp.float32, -s2, s2)
    return (wl1, wr1, b1, wl2, wr2, b2)


def graphsage_ref(x, edge_index, params):
    """Pure-JAX f32 reference (same math, no Pallas, no bf16)."""
    n = x.shape[0]
    src, dst = edge_index[0], edge_index[1]
    adj = jnp.zeros((n, n), jnp.float32).at[dst, src].add(1.0)
    a = adj / jnp.maximum(adj.sum(axis=1, keepdims=True), 1.0)
    wl1, wr1, b1, wl2, wr2, b2 = params
    h1 = jnp.maximum((a @ x) @ wl1 + x @ wr1 + b1, 0.0)
    return (a @ h1) @ wl2 + h1 @ wr2 + b2


if __name__ == "__main__":
    N, E = 64, 256                      # nodes, edges
    INPUT_DIM, HIDDEN_DIM, OUTPUT_DIM = 16, 32, 8

    key = jax.random.PRNGKey(0)
    kx, ke, kp = jax.random.split(key, 3)

    x = jax.random.normal(kx, (N, INPUT_DIM), jnp.float32)
    edge_index = jax.random.randint(ke, (2, E), 0, N, jnp.int32)
    params = init_params(kp, INPUT_DIM, HIDDEN_DIM, OUTPUT_DIM)

    fwd = jax.jit(graphsage_forward)
    out = fwd(x, edge_index, params)
    out = jax.block_until_ready(out)

    ref = graphsage_ref(x, edge_index, params)
    assert out.shape == (N, OUTPUT_DIM)
    # bf16 feature/weight matmuls (f32 accumulation, exact int8 counts + f32 1/deg)
    # -> looser tolerance than the pure-f32 reference.
    max_err = float(jnp.max(jnp.abs(out - ref)))
    assert jnp.allclose(out, ref, atol=3e-2, rtol=3e-2), f"max abs err {max_err}"

    print("KERNEL_OK")
</pallas_src>

<mosaic_0001>
module attributes {stable_mosaic.version = 11 : i64} {
  func.func private @main(%arg0: i32) attributes {dimension_semantics = [#tpu.dimension_semantics<core_parallel>], iteration_bounds = array<i64: 2>, tpu.core_type = #tpu.core_type<sc_scalar_subcore>, window_params = []} {
    return
  }
}

module attributes {stable_mosaic.version = 11 : i64} {
  func.func private @main(%arg0: i32) attributes {dimension_semantics = [#tpu.dimension_semantics<core_parallel>], iteration_bounds = array<i64: 2>, tpu.core_type = #tpu.core_type<sc_scalar_subcore>, window_params = []} {
    return
  }
}

module attributes {stable_mosaic.version = 11 : i64} {
  func.func @sage_layer_kernel(%arg0: i32, %arg1: i32, %arg2: memref<128x128xi8, #tpu.memory_space<vmem>>, %arg3: memref<128x128xbf16, #tpu.memory_space<vmem>>, %arg4: memref<128x128xbf16, #tpu.memory_space<vmem>>, %arg5: memref<128x1xf32, #tpu.memory_space<vmem>>, %arg6: memref<128x128xbf16, #tpu.memory_space<vmem>>, %arg7: memref<128x128xbf16, #tpu.memory_space<vmem>>, %arg8: memref<1x128xf32, #tpu.memory_space<vmem>>, %arg9: memref<128x128xbf16, #tpu.memory_space<vmem>>, %arg10: memref<128x128xf32, #tpu.memory_space<vmem>>) attributes {dimension_semantics = [#tpu.dimension_semantics<parallel>, #tpu.dimension_semantics<arbitrary>], iteration_bounds = array<i64: 1, 1>, scalar_prefetch = 0 : i64, scratch_operands = 1 : i64, tpu.core_type = #tpu.core_type<tc>, window_params = [{transform_indices = @transform_0, window_bounds = array<i64: 128, 128>}, {transform_indices = @transform_1, window_bounds = array<i64: 128, 128>}, {transform_indices = @transform_2, window_bounds = array<i64: 128, 128>}, {transform_indices = @transform_3, window_bounds = array<i64: 128, 1>}, {pipeline_mode = #tpu.pipeline_mode<synchronous>, transform_indices = @transform_4, window_bounds = array<i64: 128, 128>}, {pipeline_mode = #tpu.pipeline_mode<synchronous>, transform_indices = @transform_5, window_bounds = array<i64: 128, 128>}, {pipeline_mode = #tpu.pipeline_mode<synchronous>, transform_indices = @transform_6, window_bounds = array<i64: 1, 128>}, {transform_indices = @transform_7, window_bounds = array<i64: 128, 128>}]} {
    %c0_i32 = arith.constant 0 : i32
    %0 = arith.cmpi eq, %arg1, %c0_i32 : i32
    %1 = arith.extui %0 : i1 to i32
    %c0_i32_0 = arith.constant 0 : i32
    %2 = arith.cmpi ne, %1, %c0_i32_0 : i32
    scf.if %2 {
      %cst_10 = arith.constant 0.000000e+00 : f32
      %13 = vector.broadcast %cst_10 : f32 to vector<128x128xf32>
      %c0_11 = arith.constant 0 : index
      %c0_12 = arith.constant 0 : index
      %14 = vector.load %arg10[%c0_11, %c0_12] : memref<128x128xf32, #tpu.memory_space<vmem>>, vector<128x128xf32>
      tpu.vector_store %arg10[%c0_11, %c0_12], %13 {strides = array<i32>} : memref<128x128xf32, #tpu.memory_space<vmem>>, vector<128x128xf32>,
    } else {
    }
    %c0 = arith.constant 0 : index
    %c0_1 = arith.constant 0 : index
    %3 = vector.load %arg10[%c0, %c0_1] : memref<128x128xf32, #tpu.memory_space<vmem>>, vector<128x128xf32>
    %c0_2 = arith.constant 0 : index
    %c0_3 = arith.constant 0 : index
    %4 = vector.load %arg2[%c0_2, %c0_3] : memref<128x128xi8, #tpu.memory_space<vmem>>, vector<128x128xi8>
    %5 = arith.sitofp %4 : vector<128x128xi8> to vector<128x128xbf16>
    %c0_4 = arith.constant 0 : index
    %c0_5 = arith.constant 0 : index
    %6 = vector.load %arg3[%c0_4, %c0_5] : memref<128x128xbf16, #tpu.memory_space<vmem>>, vector<128x128xbf16>
    %cst = arith.constant dense<0.000000e+00> : vector<128x128xf32>
    %7 = tpu.matmul %5, %6, %cst {dimension_numbers = #tpu.dot_dimension_numbers<[1], [0], [0], [1], [0, 0, 1, 1], [], []>} : vector<128x128xbf16>, vector<128x128xbf16>, vector<128x128xf32> -> vector<128x128xf32>
    %8 = arith.addf %3, %7 : vector<128x128xf32>
    %c0_6 = arith.constant 0 : index
    %c0_7 = arith.constant 0 : index
    %9 = vector.load %arg10[%c0_6, %c0_7] : memref<128x128xf32, #tpu.memory_space<vmem>>, vector<128x128xf32>
    tpu.vector_store %arg10[%c0_6, %c0_7], %8 {strides = array<i32>} : memref<128x128xf32, #tpu.memory_space<vmem>>, vector<128x128xf32>,
    %c0_i32_8 = arith.constant 0 : i32
    %10 = arith.cmpi eq, %arg1, %c0_i32_8 : i32
    %11 = arith.extui %10 : i1 to i32
    %c0_i32_9 = arith.constant 0 : i32
    %12 = arith.cmpi ne, %11, %c0_i32_9 : i32
    scf.if %12 {
      %c0_10 = arith.constant 0 : index
      %c0_11 = arith.constant 0 : index
      %13 = vector.load %arg10[%c0_10, %c0_11] : memref<128x128xf32, #tpu.memory_space<vmem>>, vector<128x128xf32>
      %c0_12 = arith.constant 0 : index
      %c0_13 = arith.constant 0 : index
      %14 = vector.load %arg5[%c0_12, %c0_13] : memref<128x1xf32, #tpu.memory_space<vmem>>, vector<128x1xf32>
      %15 = vector.broadcast %14 : vector<128x1xf32> to vector<128x128xf32>
      %16 = arith.mulf %13, %15 : vector<128x128xf32>
      %17 = arith.truncf %16 : vector<128x128xf32> to vector<128x128xbf16>
      %c0_14 = arith.constant 0 : index
      %c0_15 = arith.constant 0 : index
      %18 = vector.load %arg6[%c0_14, %c0_15] : memref<128x128xbf16, #tpu.memory_space<vmem>>, vector<128x128xbf16>
      %cst_16 = arith.constant dense<0.000000e+00> : vector<128x128xf32>
      %19 = tpu.matmul %17, %18, %cst_16 {dimension_numbers = #tpu.dot_dimension_numbers<[1], [0], [0], [1], [0, 0, 1, 1], [], []>} : vector<128x128xbf16>, vector<128x128xbf16>, vector<128x128xf32> -> vector<128x128xf32>
      %c0_17 = arith.constant 0 : index
      %c0_18 = arith.constant 0 : index
      %20 = vector.load %arg4[%c0_17, %c0_18] : memref<128x128xbf16, #tpu.memory_space<vmem>>, vector<128x128xbf16>
      %c0_19 = arith.constant 0 : index
      %c0_20 = arith.constant 0 : index
      %21 = vector.load %arg7[%c0_19, %c0_20] : memref<128x128xbf16, #tpu.memory_space<vmem>>, vector<128x128xbf16>
      %cst_21 = arith.constant dense<0.000000e+00> : vector<128x128xf32>
      %22 = tpu.matmul %20, %21, %cst_21 {dimension_numbers = #tpu.dot_dimension_numbers<[1], [0], [0], [1], [0, 0, 1, 1], [], []>} : vector<128x128xbf16>, vector<128x128xbf16>, vector<128x128xf32> -> vector<128x128xf32>
      %23 = arith.addf %19, %22 : vector<128x128xf32>
      %c0_22 = arith.constant 0 : index
      %c0_23 = arith.constant 0 : index
      %24 = vector.load %arg8[%c0_22, %c0_23] : memref<1x128xf32, #tpu.memory_space<vmem>>, vector<1x128xf32>
      %25 = vector.broadcast %24 : vector<1x128xf32> to vector<128x128xf32>
      %26 = arith.addf %23, %25 : vector<128x128xf32>
      %cst_24 = arith.constant 0.000000e+00 : f32
      %27 = vector.broadcast %cst_24 : f32 to vector<128x128xf32>
      %28 = arith.maximumf %26, %27 : vector<128x128xf32>
      %29 = arith.truncf %28 : vector<128x128xf32> to vector<128x128xbf16>
      %c0_25 = arith.constant 0 : index
      %c0_26 = arith.constant 0 : index
      %30 = vector.load %arg9[%c0_25, %c0_26] : memref<128x128xbf16, #tpu.memory_space<vmem>>, vector<128x128xbf16>
      tpu.vector_store %arg9[%c0_25, %c0_26], %29 {strides = array<i32>} : memref<128x128xbf16, #tpu.memory_space<vmem>>, vector<128x128xbf16>,
    } else {
    }
    return
  }
  func.func @transform_0(%arg0: i32, %arg1: i32) -> (i32, i32) {
    %c0_i32 = arith.constant 0 : i32
    return %arg0, %arg1 : i32, i32
  }
  func.func @transform_1(%arg0: i32, %arg1: i32) -> (i32, i32) {
    %c0_i32 = arith.constant 0 : i32
    %c0_i32_0 = arith.constant 0 : i32
    return %arg1, %c0_i32 : i32, i32
  }
  func.func @transform_2(%arg0: i32, %arg1: i32) -> (i32, i32) {
    %c0_i32 = arith.constant 0 : i32
    %c0_i32_0 = arith.constant 0 : i32
    return %arg0, %c0_i32 : i32, i32
  }
  func.func @transform_3(%arg0: i32, %arg1: i32) -> (i32, i32) {
    %c0_i32 = arith.constant 0 : i32
    %c0_i32_0 = arith.constant 0 : i32
    return %arg0, %c0_i32 : i32, i32
  }
  func.func @transform_4(%arg0: i32, %arg1: i32) -> (i32, i32) {
    %c0_i32 = arith.constant 0 : i32
    %c0_i32_0 = arith.constant 0 : i32
    %c0_i32_1 = arith.constant 0 : i32
    return %c0_i32, %c0_i32_0 : i32, i32
  }
  func.func @transform_5(%arg0: i32, %arg1: i32) -> (i32, i32) {
    %c0_i32 = arith.constant 0 : i32
    %c0_i32_0 = arith.constant 0 : i32
    %c0_i32_1 = arith.constant 0 : i32
    return %c0_i32, %c0_i32_0 : i32, i32
  }
  func.func @transform_6(%arg0: i32, %arg1: i32) -> (i32, i32) {
    %c0_i32 = arith.constant 0 : i32
    %c0_i32_0 = arith.constant 0 : i32
    %c0_i32_1 = arith.constant 0 : i32
    return %c0_i32, %c0_i32_0 : i32, i32
  }
  func.func @transform_7(%arg0: i32, %arg1: i32) -> (i32, i32) {
    %c0_i32 = arith.constant 0 : i32
    %c0_i32_0 = arith.constant 0 : i32
    return %arg0, %c0_i32 : i32, i32
  }
}

module attributes {stable_mosaic.version = 11 : i64} {
  func.func @sage_layer_kernel(%arg0: i32, %arg1: i32, %arg2: memref<128x128xi8, #tpu.memory_space<vmem>>, %arg3: memref<128x128xbf16, #tpu.memory_space<vmem>>, %arg4: memref<128x128xbf16, #tpu.memory_space<vmem>>, %arg5: memref<128x1xf32, #tpu.memory_space<vmem>>, %arg6: memref<128x128xbf16, #tpu.memory_space<vmem>>, %arg7: memref<128x128xbf16, #tpu.memory_space<vmem>>, %arg8: memref<1x128xf32, #tpu.memory_space<vmem>>, %arg9: memref<128x128xf32, #tpu.memory_space<vmem>>, %arg10: memref<128x128xf32, #tpu.memory_space<vmem>>) attributes {dimension_semantics = [#tpu.dimension_semantics<parallel>, #tpu.dimension_semantics<arbitrary>], iteration_bounds = array<i64: 1, 1>, scalar_prefetch = 0 : i64, scratch_operands = 1 : i64, tpu.core_type = #tpu.core_type<tc>, window_params = [{transform_indices = @transform_0, window_bounds = array<i64: 128, 128>}, {transform_indices = @transform_1, window_bounds = array<i64: 128, 128>}, {transform_indices = @transform_2, window_bounds = array<i64: 128, 128>}, {transform_indices = @transform_3, window_bounds = array<i64: 128, 1>}, {pipeline_mode = #tpu.pipeline_mode<synchronous>, transform_indices = @transform_4, window_bounds = array<i64: 128, 128>}, {pipeline_mode = #tpu.pipeline_mode<synchronous>, transform_indices = @transform_5, window_bounds = array<i64: 128, 128>}, {pipeline_mode = #tpu.pipeline_mode<synchronous>, transform_indices = @transform_6, window_bounds = array<i64: 1, 128>}, {transform_indices = @transform_7, window_bounds = array<i64: 128, 128>}]} {
    %c0_i32 = arith.constant 0 : i32
    %0 = arith.cmpi eq, %arg1, %c0_i32 : i32
    %1 = arith.extui %0 : i1 to i32
    %c0_i32_0 = arith.constant 0 : i32
    %2 = arith.cmpi ne, %1, %c0_i32_0 : i32
    scf.if %2 {
      %cst_10 = arith.constant 0.000000e+00 : f32
      %13 = vector.broadcast %cst_10 : f32 to vector<128x128xf32>
      %c0_11 = arith.constant 0 : index
      %c0_12 = arith.constant 0 : index
      %14 = vector.load %arg10[%c0_11, %c0_12] : memref<128x128xf32, #tpu.memory_space<vmem>>, vector<128x128xf32>
      tpu.vector_store %arg10[%c0_11, %c0_12], %13 {strides = array<i32>} : memref<128x128xf32, #tpu.memory_space<vmem>>, vector<128x128xf32>,
    } else {
    }
    %c0 = arith.constant 0 : index
    %c0_1 = arith.constant 0 : index
    %3 = vector.load %arg10[%c0, %c0_1] : memref<128x128xf32, #tpu.memory_space<vmem>>, vector<128x128xf32>
    %c0_2 = arith.constant 0 : index
    %c0_3 = arith.constant 0 : index
    %4 = vector.load %arg2[%c0_2, %c0_3] : memref<128x128xi8, #tpu.memory_space<vmem>>, vector<128x128xi8>
    %5 = arith.sitofp %4 : vector<128x128xi8> to vector<128x128xbf16>
    %c0_4 = arith.constant 0 : index
    %c0_5 = arith.constant 0 : index
    %6 = vector.load %arg3[%c0_4, %c0_5] : memref<128x128xbf16, #tpu.memory_space<vmem>>, vector<128x128xbf16>
    %cst = arith.constant dense<0.000000e+00> : vector<128x128xf32>
    %7 = tpu.matmul %5, %6, %cst {dimension_numbers = #tpu.dot_dimension_numbers<[1], [0], [0], [1], [0, 0, 1, 1], [], []>} : vector<128x128xbf16>, vector<128x128xbf16>, vector<128x128xf32> -> vector<128x128xf32>
    %8 = arith.addf %3, %7 : vector<128x128xf32>
    %c0_6 = arith.constant 0 : index
    %c0_7 = arith.constant 0 : index
    %9 = vector.load %arg10[%c0_6, %c0_7] : memref<128x128xf32, #tpu.memory_space<vmem>>, vector<128x128xf32>
    tpu.vector_store %arg10[%c0_6, %c0_7], %8 {strides = array<i32>} : memref<128x128xf32, #tpu.memory_space<vmem>>, vector<128x128xf32>,
    %c0_i32_8 = arith.constant 0 : i32
    %10 = arith.cmpi eq, %arg1, %c0_i32_8 : i32
    %11 = arith.extui %10 : i1 to i32
    %c0_i32_9 = arith.constant 0 : i32
    %12 = arith.cmpi ne, %11, %c0_i32_9 : i32
    scf.if %12 {
      %c0_10 = arith.constant 0 : index
      %c0_11 = arith.constant 0 : index
      %13 = vector.load %arg10[%c0_10, %c0_11] : memref<128x128xf32, #tpu.memory_space<vmem>>, vector<128x128xf32>
      %c0_12 = arith.constant 0 : index
      %c0_13 = arith.constant 0 : index
      %14 = vector.load %arg5[%c0_12, %c0_13] : memref<128x1xf32, #tpu.memory_space<vmem>>, vector<128x1xf32>
      %15 = vector.broadcast %14 : vector<128x1xf32> to vector<128x128xf32>
      %16 = arith.mulf %13, %15 : vector<128x128xf32>
      %17 = arith.truncf %16 : vector<128x128xf32> to vector<128x128xbf16>
      %c0_14 = arith.constant 0 : index
      %c0_15 = arith.constant 0 : index
      %18 = vector.load %arg6[%c0_14, %c0_15] : memref<128x128xbf16, #tpu.memory_space<vmem>>, vector<128x128xbf16>
      %cst_16 = arith.constant dense<0.000000e+00> : vector<128x128xf32>
      %19 = tpu.matmul %17, %18, %cst_16 {dimension_numbers = #tpu.dot_dimension_numbers<[1], [0], [0], [1], [0, 0, 1, 1], [], []>} : vector<128x128xbf16>, vector<128x128xbf16>, vector<128x128xf32> -> vector<128x128xf32>
      %c0_17 = arith.constant 0 : index
      %c0_18 = arith.constant 0 : index
      %20 = vector.load %arg4[%c0_17, %c0_18] : memref<128x128xbf16, #tpu.memory_space<vmem>>, vector<128x128xbf16>
      %c0_19 = arith.constant 0 : index
      %c0_20 = arith.constant 0 : index
      %21 = vector.load %arg7[%c0_19, %c0_20] : memref<128x128xbf16, #tpu.memory_space<vmem>>, vector<128x128xbf16>
      %cst_21 = arith.constant dense<0.000000e+00> : vector<128x128xf32>
      %22 = tpu.matmul %20, %21, %cst_21 {dimension_numbers = #tpu.dot_dimension_numbers<[1], [0], [0], [1], [0, 0, 1, 1], [], []>} : vector<128x128xbf16>, vector<128x128xbf16>, vector<128x128xf32> -> vector<128x128xf32>
      %23 = arith.addf %19, %22 : vector<128x128xf32>
      %c0_22 = arith.constant 0 : index
      %c0_23 = arith.constant 0 : index
      %24 = vector.load %arg8[%c0_22, %c0_23] : memref<1x128xf32, #tpu.memory_space<vmem>>, vector<1x128xf32>
      %25 = vector.broadcast %24 : vector<1x128xf32> to vector<128x128xf32>
      %26 = arith.addf %23, %25 : vector<128x128xf32>
      %c0_24 = arith.constant 0 : index
      %c0_25 = arith.constant 0 : index
      %27 = vector.load %arg9[%c0_24, %c0_25] : memref<128x128xf32, #tpu.memory_space<vmem>>, vector<128x128xf32>
      tpu.vector_store %arg9[%c0_24, %c0_25], %26 {strides = array<i32>} : memref<128x128xf32, #tpu.memory_space<vmem>>, vector<128x128xf32>,
    } else {
    }
    return
  }
  func.func @transform_0(%arg0: i32, %arg1: i32) -> (i32, i32) {
    %c0_i32 = arith.constant 0 : i32
    return %arg0, %arg1 : i32, i32
  }
  func.func @transform_1(%arg0: i32, %arg1: i32) -> (i32, i32) {
    %c0_i32 = arith.constant 0 : i32
    %c0_i32_0 = arith.constant 0 : i32
    return %arg1, %c0_i32 : i32, i32
  }
  func.func @transform_2(%arg0: i32, %arg1: i32) -> (i32, i32) {
    %c0_i32 = arith.constant 0 : i32
    %c0_i32_0 = arith.constant 0 : i32
    return %arg0, %c0_i32 : i32, i32
  }
  func.func @transform_3(%arg0: i32, %arg1: i32) -> (i32, i32) {
    %c0_i32 = arith.constant 0 : i32
    %c0_i32_0 = arith.constant 0 : i32
    return %arg0, %c0_i32 : i32, i32
  }
  func.func @transform_4(%arg0: i32, %arg1: i32) -> (i32, i32) {
    %c0_i32 = arith.constant 0 : i32
    %c0_i32_0 = arith.constant 0 : i32
    %c0_i32_1 = arith.constant 0 : i32
    return %c0_i32, %c0_i32_0 : i32, i32
  }
  func.func @transform_5(%arg0: i32, %arg1: i32) -> (i32, i32) {
    %c0_i32 = arith.constant 0 : i32
    %c0_i32_0 = arith.constant 0 : i32
    %c0_i32_1 = arith.constant 0 : i32
    return %c0_i32, %c0_i32_0 : i32, i32
  }
  func.func @transform_6(%arg0: i32, %arg1: i32) -> (i32, i32) {
    %c0_i32 = arith.constant 0 : i32
    %c0_i32_0 = arith.constant 0 : i32
    %c0_i32_1 = arith.constant 0 : i32
    return %c0_i32, %c0_i32_0 : i32, i32
  }
  func.func @transform_7(%arg0: i32, %arg1: i32) -> (i32, i32) {
    %c0_i32 = arith.constant 0 : i32
    %c0_i32_0 = arith.constant 0 : i32
    return %arg0, %c0_i32 : i32, i32
  }
}

</mosaic_0001>

<llo_original>
// kernel: graphsage_forward.3
$region0: #{graphsage_forward.3}
  #allocation0 [shape = 'u32[]', space=smem, size = 0x4, offset = 0x4, fixed_abs, tag = 'smem constant byte address 0x4 - core index']
  #allocation1 [shape = 'u32[144,128]{1,0:T(1,128)}', space=vmem, size = 0x12000, scoped, tag = 'internal scratch']
  #allocation2 [shape = 'f32[128,128]{1,0:T(8,128)}', space=vmem, size = 0x10000, scoped, tag = 'scratch operand']
  %s0 = inlined_call_operand.vmem [shape: s8[128,128], index: 0, kind: input, shape index: {}]
  %s1 = inlined_call_operand.vmem [shape: bf16[128,128], index: 1, kind: input, shape index: {}, may-alias: {1,2}]
  %s2 = inlined_call_operand.vmem [shape: bf16[128,128], index: 2, kind: input, shape index: {}, may-alias: {1,2}]
  %s3 = inlined_call_operand.vmem [shape: f32[128,1], index: 3, kind: input, shape index: {}]
  %s4 = inlined_call_operand.vmem [shape: bf16[128,128], index: 4, kind: input, shape index: {}]
  %s5 = inlined_call_operand.vmem [shape: bf16[128,128], index: 5, kind: input, shape index: {}]
  %s6 = inlined_call_operand.vmem [shape: f32[1,128], index: 6, kind: input, shape index: {}]
  %s7 = inlined_call_operand.vmem [shape: f32[128,128], index: 7, kind: output, shape index: {}]
  %s8 = sld [smem:[#allocation0]]
  $region46: #{graphsage_forward.3} parent=0
    _
  %s10 = ssub.s32 1, %s8
  %s11 = scalar_select 0, %s10, %s8
  // Predicated region
  $region2: #{graphsage_forward.3} parent=0 // pred_check
    _
  $region3: #{graphsage_forward.3} parent=0 // pred_check_branch
    %13 = sbr.rel (0) target = $region5
  $region4: #{graphsage_forward.3} parent=0 // pred_region
    _
  $region5: #{graphsage_forward.3} parent=0 // pred_fallthru
    _
  // Predicated region
  $region6: #{graphsage_forward.3} parent=0 // pred_check
    _
  $region7: #{graphsage_forward.3} parent=0 // pred_check_branch
    %15 = sbr.rel (0) target = $region9
  $region8: #{graphsage_forward.3} parent=0 // pred_region
    _
  $region9: #{graphsage_forward.3} parent=0 // pred_fallthru
    _
  // Predicated region
  $region10: #{graphsage_forward.3} parent=0 // pred_check
    _
  $region11: #{graphsage_forward.3} parent=0 // pred_check_branch
    %17 = sbr.rel (0) target = $region13
  $region12: #{graphsage_forward.3} parent=0 // pred_region
    _
  $region13: #{graphsage_forward.3} parent=0 // pred_fallthru
    _
  // Predicated region
  $region14: #{graphsage_forward.3} parent=0 // pred_check
    _
  $region15: #{graphsage_forward.3} parent=0 // pred_check_branch
    %19 = sbr.rel (0) target = $region17
  $region16: #{graphsage_forward.3} parent=0 // pred_region
    _
  $region17: #{graphsage_forward.3} parent=0 // pred_fallthru
    _
  // Predicated region
  $region18: #{graphsage_forward.3} parent=0 // pred_check
    _
  $region19: #{graphsage_forward.3} parent=0 // pred_check_branch
    %21 = sbr.rel (0) target = $region21
  $region20: #{graphsage_forward.3} parent=0 // pred_region
    _
  $region21: #{graphsage_forward.3} parent=0 // pred_fallthru
    _
  // Predicated region
  $region22: #{graphsage_forward.3} parent=0 // pred_check
    _
  $region23: #{graphsage_forward.3} parent=0 // pred_check_branch
    %23 = sbr.rel (0) target = $region25
  $region24: #{graphsage_forward.3} parent=0 // pred_region
    _
  $region25: #{graphsage_forward.3} parent=0 // pred_fallthru
    _
  // Predicated region
  $region26: #{graphsage_forward.3} parent=0 // pred_check
    _
  $region27: #{graphsage_forward.3} parent=0 // pred_check_branch
    %25 = sbr.rel (0) target = $region29
  $region28: #{graphsage_forward.3} parent=0 // pred_region
    _
  $region29: #{graphsage_forward.3} parent=0 // pred_fallthru
    _
  %p27 = scmp.eq.s32.totalorder 0, 0
  // Predicated region
  $region30: #{graphsage_forward.3} parent=0 // pred_check
    %p28 = pneg %p27
  $region31: #{graphsage_forward.3} parent=0 // pred_check_branch
    %30 = sbr.rel (%p28) target = $region33
  $region32: #{graphsage_forward.3} parent=0 // pred_region
    %31 = vst [vmem:[#allocation2] sm:$0xff] 0.0
    %32 = vst [vmem:[#allocation2 + $0x8] sm:$0xff] 0.0
    %33 = vst [vmem:[#allocation2 + $0x10] sm:$0xff] 0.0
    %34 = vst [vmem:[#allocation2 + $0x18] sm:$0xff] 0.0
    %35 = vst [vmem:[#allocation2 + $0x20] sm:$0xff] 0.0
    %36 = vst [vmem:[#allocation2 + $0x28] sm:$0xff] 0.0
    %37 = vst [vmem:[#allocation2 + $0x30] sm:$0xff] 0.0
    %38 = vst [vmem:[#allocation2 + $0x38] sm:$0xff] 0.0
    %39 = vst [vmem:[#allocation2 + $0x40] sm:$0xff] 0.0
    %40 = vst [vmem:[#allocation2 + $0x48] sm:$0xff] 0.0
    %41 = vst [vmem:[#allocation2 + $0x50] sm:$0xff] 0.0
    %42 = vst [vmem:[#allocation2 + $0x58] sm:$0xff] 0.0
    %43 = vst [vmem:[#allocation2 + $0x60] sm:$0xff] 0.0
    %44 = vst [vmem:[#allocation2 + $0x68] sm:$0xff] 0.0
    %45 = vst [vmem:[#allocation2 + $0x70] sm:$0xff] 0.0
    %46 = vst [vmem:[#allocation2 + $0x78] sm:$0xff] 0.0
  $region33: #{graphsage_forward.3} parent=0 // pred_fallthru
    _
  %v47 = vld [vmem:[#allocation2] sm:$0xff]
  %v48 = vld [vmem:[#allocation2 + $0x8] sm:$0xff]
  %v49 = vld [vmem:[#allocation2 + $0x10] sm:$0xff]
  %v50 = vld [vmem:[#allocation2 + $0x18] sm:$0xff]
  %v51 = vld [vmem:[#allocation2 + $0x20] sm:$0xff]
  %v52 = vld [vmem:[#allocation2 + $0x28] sm:$0xff]
  %v53 = vld [vmem:[#allocation2 + $0x30] sm:$0xff]
  %v54 = vld [vmem:[#allocation2 + $0x38] sm:$0xff]
  %v55 = vld [vmem:[#allocation2 + $0x40] sm:$0xff]
  %v56 = vld [vmem:[#allocation2 + $0x48] sm:$0xff]
  %v57 = vld [vmem:[#allocation2 + $0x50] sm:$0xff]
  %v58 = vld [vmem:[#allocation2 + $0x58] sm:$0xff]
  %v59 = vld [vmem:[#allocation2 + $0x60] sm:$0xff]
  %v60 = vld [vmem:[#allocation2 + $0x68] sm:$0xff]
  %v61 = vld [vmem:[#allocation2 + $0x70] sm:$0xff]
  %v62 = vld [vmem:[#allocation2 + $0x78] sm:$0xff]
  %v63 = vld [vmem:[%s0] sm:$0x3]
  %v64 = vld [vmem:[%s0 + $0x2] sm:$0x3]
  %v65 = vld [vmem:[%s0 + $0x4] sm:$0x3]
  %v66 = vld [vmem:[%s0 + $0x6] sm:$0x3]
  %v67 = vld [vmem:[%s0 + $0x8] sm:$0x3]
  %v68 = vld [vmem:[%s0 + $0xa] sm:$0x3]
  %v69 = vld [vmem:[%s0 + $0xc] sm:$0x3]
  %v70 = vld [vmem:[%s0 + $0xe] sm:$0x3]
  %v71 = vld [vmem:[%s0 + $0x10] sm:$0x3]
  %v72 = vld [vmem:[%s0 + $0x12] sm:$0x3]
  %v73 = vld [vmem:[%s0 + $0x14] sm:$0x3]
  %v74 = vld [vmem:[%s0 + $0x16] sm:$0x3]
  %v75 = vld [vmem:[%s0 + $0x18] sm:$0x3]
  %v76 = vld [vmem:[%s0 + $0x1a] sm:$0x3]
  %v77 = vld [vmem:[%s0 + $0x1c] sm:$0x3]
  %v78 = vld [vmem:[%s0 + $0x1e] sm:$0x3]
  %v79 = vunpack.c.l.s8.bf16 %v63
  %v80 = vunpack.c.l.s8.bf16 %v64
  %v81 = vunpack.c.l.s8.bf16 %v65
  %v82 = vunpack.c.l.s8.bf16 %v66
  %v83 = vunpack.c.l.s8.bf16 %v67
  %v84 = vunpack.c.l.s8.bf16 %v68
  %v85 = vunpack.c.l.s8.bf16 %v69
  %v86 = vunpack.c.l.s8.bf16 %v70
  %v87 = vunpack.c.l.s8.bf16 %v71
  %v88 = vunpack.c.l.s8.bf16 %v72
  %v89 = vunpack.c.l.s8.bf16 %v73
  %v90 = vunpack.c.l.s8.bf16 %v74
  %v91 = vunpack.c.l.s8.bf16 %v75
  %v92 = vunpack.c.l.s8.bf16 %v76
  %v93 = vunpack.c.l.s8.bf16 %v77
  %v94 = vunpack.c.l.s8.bf16 %v78
  %v95 = vld [vmem:[%s1] sm:$0xf]
  %v96 = vld [vmem:[%s1 + $0x4] sm:$0xf]
  %v97 = vld [vmem:[%s1 + $0x8] sm:$0xf]
  %v98 = vld [vmem:[%s1 + $0xc] sm:$0xf]
  %v99 = vld [vmem:[%s1 + $0x10] sm:$0xf]
  %v100 = vld [vmem:[%s1 + $0x14] sm:$0xf]
  %v101 = vld [vmem:[%s1 + $0x18] sm:$0xf]
  %v102 = vld [vmem:[%s1 + $0x1c] sm:$0xf]
  %v103 = vld [vmem:[%s1 + $0x20] sm:$0xf]
  %v104 = vld [vmem:[%s1 + $0x24] sm:$0xf]
  %v105 = vld [vmem:[%s1 + $0x28] sm:$0xf]
  %v106 = vld [vmem:[%s1 + $0x2c] sm:$0xf]
  %v107 = vld [vmem:[%s1 + $0x30] sm:$0xf]
  %v108 = vld [vmem:[%s1 + $0x34] sm:$0xf]
  %v109 = vld [vmem:[%s1 + $0x38] sm:$0xf]
  %v110 = vld [vmem:[%s1 + $0x3c] sm:$0xf]
  %v127 = vunpack.c.l.b16 %v79
  %v128 = vunpack.c.l.b16 %v80
  %v129 = vunpack.c.l.b16 %v81
  %v130 = vunpack.c.l.b16 %v82
  %v131 = vunpack.c.l.b16 %v83
  %v132 = vunpack.c.l.b16 %v84
  %v133 = vunpack.c.l.b16 %v85
  %v134 = vunpack.c.l.b16 %v86
  %v135 = vunpack.c.l.b16 %v87
  %v136 = vunpack.c.l.b16 %v88
  %v137 = vunpack.c.l.b16 %v89
  %v138 = vunpack.c.l.b16 %v90
  %v139 = vunpack.c.l.b16 %v91
  %v140 = vunpack.c.l.b16 %v92
  %v141 = vunpack.c.l.b16 %v93
  %v142 = vunpack.c.l.b16 %v94
  %v143 = vpack.c.b16 %v128, %v127
  %v144 = vpack.c.b16 %v130, %v129
  %v145 = vpack.c.b16 %v132, %v131
  %v146 = vpack.c.b16 %v134, %v133
  %v147 = vpack.c.b16 %v136, %v135
  %v148 = vpack.c.b16 %v138, %v137
  %v149 = vpack.c.b16 %v140, %v139
  %v150 = vpack.c.b16 %v142, %v141
  %v175 = vunpack.c.l.b16 %v95
  %v176 = vunpack.c.l.b16 %v96
  %v177 = vunpack.c.l.b16 %v97
  %v178 = vunpack.c.l.b16 %v98
  %v179 = vunpack.c.l.b16 %v99
  %v180 = vunpack.c.l.b16 %v100
  %v181 = vunpack.c.l.b16 %v101
  %v182 = vunpack.c.l.b16 %v102
  %v183 = vunpack.c.l.b16 %v103
  %v184 = vunpack.c.l.b16 %v104
  %v185 = vunpack.c.l.b16 %v105
  %v186 = vunpack.c.l.b16 %v106
  %v187 = vunpack.c.l.b16 %v107
  %v188 = vunpack.c.l.b16 %v108
  %v189 = vunpack.c.l.b16 %v109
  %v190 = vunpack.c.l.b16 %v110
  %v191 = vpack.c.b16 %v176, %v175
  %v192 = vpack.c.b16 %v178, %v177
  %v193 = vpack.c.b16 %v180, %v179
  %v194 = vpack.c.b16 %v182, %v181
  %v195 = vpack.c.b16 %v184, %v183
  %v196 = vpack.c.b16 %v186, %v185
  %v197 = vpack.c.b16 %v188, %v187
  %v198 = vpack.c.b16 %v190, %v189
  %207 = vmatprep.subr.bf16.mxu0 0
  %208 = vmatpush1.bf16.msra.mxu0 %v191
  %209 = vmatprep.subr.bf16.mxu0 0
  %210 = vmatpush1.bf16.msra.mxu0 %v192
  %211 = vmatprep.subr.bf16.mxu0 0
  %212 = vmatpush1.bf16.msra.mxu0 %v193
  %213 = vmatprep.subr.bf16.mxu0 0
  %214 = vmatpush1.bf16.msra.mxu0 %v194
  %215 = vmatprep.subr.bf16.mxu0 0
  %216 = vmatpush1.bf16.msra.mxu0 %v195
  %217 = vmatprep.subr.bf16.mxu0 0
  %218 = vmatpush1.bf16.msra.mxu0 %v196
  %219 = vmatprep.subr.bf16.mxu0 0
  %220 = vmatpush1.bf16.msra.mxu0 %v197
  %221 = vmatprep.subr.bf16.mxu0 0
  %222 = vmatpush1.bf16.msra.mxu0 %v198
  %223 = vmatprep.subr.bf16.mxu0 0
  %224 = vmatpush1.bf16.msra.mxu0 0
  %225 = vmatprep.subr.bf16.mxu0 0
  %226 = vmatpush1.bf16.msra.mxu0 0
  %227 = vmatprep.subr.bf16.mxu0 0
  %228 = vmatpush1.bf16.msra.mxu0 0
  %229 = vmatprep.subr.bf16.mxu0 0
  %230 = vmatpush1.bf16.msra.mxu0 0
  %231 = vmatprep.subr.bf16.mxu0 0
  %232 = vmatpush1.bf16.msra.mxu0 0
  %233 = vmatprep.subr.bf16.mxu0 0
  %234 = vmatpush1.bf16.msra.mxu0 0
  %235 = vmatprep.subr.bf16.mxu0 0
  %236 = vmatpush1.bf16.msra.mxu0 0
  %237 = vmatprep.subr.bf16.mxu0 0
  %238 = vmatpush1.bf16.msra.mxu0 0
  %239 = vmatprep.mubr.bf16.mxu0 0
  %240 = vmatmul.mubr.bf16.gmra.mrb[0].mxu0 %v143
  %v241 = vpop.f32.mrb[0].mxu0
  %v242 = vadd.f32 0.0, %v241
  %v243 = vpop.f32.mrb[0].mxu0
  %v244 = vpop.f32.mrb[0].mxu0
  %v245 = vadd.f32 0.0, %v244
  %v246 = vpop.f32.mrb[0].mxu0
  %247 = vmatprep.mubr.bf16.mxu0 0
  %248 = vmatmul.mubr.bf16.gmra.mrb[0].mxu0 %v144
  %v249 = vpop.f32.mrb[0].mxu0
  %v250 = vadd.f32 0.0, %v249
  %v251 = vpop.f32.mrb[0].mxu0
  %v252 = vpop.f32.mrb[0].mxu0
  %v253 = vadd.f32 0.0, %v252
  %v254 = vpop.f32.mrb[0].mxu0
  %255 = vmatprep.mubr.bf16.mxu0 0
  %256 = vmatmul.mubr.bf16.gmra.mrb[0].mxu0 %v145
  %v257 = vpop.f32.mrb[0].mxu0
  %v258 = vadd.f32 0.0, %v257
  %v259 = vpop.f32.mrb[0].mxu0
  %v260 = vpop.f32.mrb[0].mxu0
  %v261 = vadd.f32 0.0, %v260
  %v262 = vpop.f32.mrb[0].mxu0
  %263 = vmatprep.mubr.bf16.mxu0 0
  %264 = vmatmul.mubr.bf16.gmra.mrb[0].mxu0 %v146
  %v265 = vpop.f32.mrb[0].mxu0
  %v266 = vadd.f32 0.0, %v265
  %v267 = vpop.f32.mrb[0].mxu0
  %v268 = vpop.f32.mrb[0].mxu0
  %v269 = vadd.f32 0.0, %v268
  %v270 = vpop.f32.mrb[0].mxu0
  %271 = vmatprep.mubr.bf16.mxu0 0
  %272 = vmatmul.mubr.bf16.gmra.mrb[0].mxu0 %v147
  %v273 = vpop.f32.mrb[0].mxu0
  %v274 = vadd.f32 0.0, %v273
  %v275 = vpop.f32.mrb[0].mxu0
  %v276 = vpop.f32.mrb[0].mxu0
  %v277 = vadd.f32 0.0, %v276
  %v278 = vpop.f32.mrb[0].mxu0
  %279 = vmatprep.mubr.bf16.mxu0 0
  %280 = vmatmul.mubr.bf16.gmra.mrb[0].mxu0 %v148
  %v281 = vpop.f32.mrb[0].mxu0
  %v282 = vadd.f32 0.0, %v281
  %v283 = vpop.f32.mrb[0].mxu0
  %v284 = vpop.f32.mrb[0].mxu0
  %v285 = vadd.f32 0.0, %v284
  %v286 = vpop.f32.mrb[0].mxu0
  %287 = vmatprep.mubr.bf16.mxu0 0
  %288 = vmatmul.mubr.bf16.gmra.mrb[0].mxu0 %v149
  %v289 = vpop.f32.mrb[0].mxu0
  %v290 = vadd.f32 0.0, %v289
  %v291 = vpop.f32.mrb[0].mxu0
  %v292 = vpop.f32.mrb[0].mxu0
  %v293 = vadd.f32 0.0, %v292
  %v294 = vpop.f32.mrb[0].mxu0
  %295 = vmatprep.mubr.bf16.mxu0 0
  %296 = vmatmul.mubr.bf16.gmra.mrb[0].mxu0 %v150
  %v297 = vpop.f32.mrb[0].mxu0
  %v298 = vadd.f32 0.0, %v297
  %v299 = vpop.f32.mrb[0].mxu0
  %v300 = vpop.f32.mrb[0].mxu0
  %v301 = vadd.f32 0.0, %v300
  %v302 = vpop.f32.mrb[0].mxu0
  %303 = vdwg.mxu0
  %v304 = vadd.f32 %v47, %v242
  %v305 = vadd.f32 %v48, %v245
  %v306 = vadd.f32 %v49, %v250
  %v307 = vadd.f32 %v50, %v253
  %v308 = vadd.f32 %v51, %v258
  %v309 = vadd.f32 %v52, %v261
  %v310 = vadd.f32 %v53, %v266
  %v311 = vadd.f32 %v54, %v269
  %v312 = vadd.f32 %v55, %v274
  %v313 = vadd.f32 %v56, %v277
  %v314 = vadd.f32 %v57, %v282
  %v315 = vadd.f32 %v58, %v285
  %v316 = vadd.f32 %v59, %v290
  %v317 = vadd.f32 %v60, %v293
  %v318 = vadd.f32 %v61, %v298
  %v319 = vadd.f32 %v62, %v301
  %320 = vst [vmem:[#allocation2] sm:$0xff] %v304
  %321 = vst [vmem:[#allocation2 + $0x8] sm:$0xff] %v305
  %322 = vst [vmem:[#allocation2 + $0x10] sm:$0xff] %v306
  %323 = vst [vmem:[#allocation2 + $0x18] sm:$0xff] %v307
  %324 = vst [vmem:[#allocation2 + $0x20] sm:$0xff] %v308
  %325 = vst [vmem:[#allocation2 + $0x28] sm:$0xff] %v309
  %326 = vst [vmem:[#allocation2 + $0x30] sm:$0xff] %v310
  %327 = vst [vmem:[#allocation2 + $0x38] sm:$0xff] %v311
  %328 = vst [vmem:[#allocation2 + $0x40] sm:$0xff] %v312
  %329 = vst [vmem:[#allocation2 + $0x48] sm:$0xff] %v313
  %330 = vst [vmem:[#allocation2 + $0x50] sm:$0xff] %v314
  %331 = vst [vmem:[#allocation2 + $0x58] sm:$0xff] %v315
  %332 = vst [vmem:[#allocation2 + $0x60] sm:$0xff] %v316
  %333 = vst [vmem:[#allocation2 + $0x68] sm:$0xff] %v317
  %334 = vst [vmem:[#allocation2 + $0x70] sm:$0xff] %v318
  %335 = vst [vmem:[#allocation2 + $0x78] sm:$0xff] %v319
  // Predicated region
  $region34: #{graphsage_forward.3} parent=0 // pred_check
    %p336 = pneg %p27
  $region35: #{graphsage_forward.3} parent=0 // pred_check_branch
    %338 = sbr.rel (%p336) target = $region37
  $region36: #{graphsage_forward.3} parent=0 // pred_region
    %v339 = vld [vmem:[#allocation2] sm:$0xff]
    %v340 = vld [vmem:[#allocation2 + $0x8] sm:$0xff]
    %v341 = vld [vmem:[#allocation2 + $0x10] sm:$0xff]
    %v342 = vld [vmem:[#allocation2 + $0x18] sm:$0xff]
    %v343 = vld [vmem:[#allocation2 + $0x20] sm:$0xff]
    %v344 = vld [vmem:[#allocation2 + $0x28] sm:$0xff]
    %v345 = vld [vmem:[#allocation2 + $0x30] sm:$0xff]
    %v346 = vld [vmem:[#allocation2 + $0x38] sm:$0xff]
    %v347 = vld [vmem:[#allocation2 + $0x40] sm:$0xff]
    %v348 = vld [vmem:[#allocation2 + $0x48] sm:$0xff]
    %v349 = vld [vmem:[#allocation2 + $0x50] sm:$0xff]
    %v350 = vld [vmem:[#allocation2 + $0x58] sm:$0xff]
    %v351 = vld [vmem:[#allocation2 + $0x60] sm:$0xff]
    %v352 = vld [vmem:[#allocation2 + $0x68] sm:$0xff]
    %v353 = vld [vmem:[#allocation2 + $0x70] sm:$0xff]
    %v354 = vld [vmem:[#allocation2 + $0x78] sm:$0xff]
    %v355 = vld [vmem:[%s3] sm:$0xff]
    %v356 = vld [vmem:[%s3 + $0x8] sm:$0xff]
    %v357 = vld [vmem:[%s3 + $0x10] sm:$0xff]
    %v358 = vld [vmem:[%s3 + $0x18] sm:$0xff]
    %v359 = vld [vmem:[%s3 + $0x20] sm:$0xff]
    %v360 = vld [vmem:[%s3 + $0x28] sm:$0xff]
    %v361 = vld [vmem:[%s3 + $0x30] sm:$0xff]
    %v362 = vld [vmem:[%s3 + $0x38] sm:$0xff]
    %v363 = vld [vmem:[%s3 + $0x40] sm:$0xff]
    %v364 = vld [vmem:[%s3 + $0x48] sm:$0xff]
    %v365 = vld [vmem:[%s3 + $0x50] sm:$0xff]
    %v366 = vld [vmem:[%s3 + $0x58] sm:$0xff]
    %v367 = vld [vmem:[%s3 + $0x60] sm:$0xff]
    %v368 = vld [vmem:[%s3 + $0x68] sm:$0xff]
    %v369 = vld [vmem:[%s3 + $0x70] sm:$0xff]
    %v370 = vld [vmem:[%s3 + $0x78] sm:$0xff]
    %372 = vset.pattern.permute.xlu0 0
    %373 = vperm.xlu0 %372, %v355
    %v374 = vpop.permute.xlu0 %373
    %377 = vset.pattern.permute.xlu0 0
    %378 = vperm.xlu0 %377, %v356
    %v379 = vpop.permute.xlu0 %378
    %382 = vset.pattern.permute.xlu0 0
    %383 = vperm.xlu0 %382, %v357
    %v384 = vpop.permute.xlu0 %383
    %387 = vset.pattern.permute.xlu0 0
    %388 = vperm.xlu0 %387, %v358
    %v389 = vpop.permute.xlu0 %388
    %392 = vset.pattern.permute.xlu0 0
    %393 = vperm.xlu0 %392, %v359
    %v394 = vpop.permute.xlu0 %393
    %397 = vset.pattern.permute.xlu0 0
    %398 = vperm.xlu0 %397, %v360
    %v399 = vpop.permute.xlu0 %398
    %402 = vset.pattern.permute.xlu0 0
    %403 = vperm.xlu0 %402, %v361
    %v404 = vpop.permute.xlu0 %403
    %407 = vset.pattern.permute.xlu0 0
    %408 = vperm.xlu0 %407, %v362
    %v409 = vpop.permute.xlu0 %408
    %412 = vset.pattern.permute.xlu0 0
    %413 = vperm.xlu0 %412, %v363
    %v414 = vpop.permute.xlu0 %413
    %417 = vset.pattern.permute.xlu0 0
    %418 = vperm.xlu0 %417, %v364
    %v419 = vpop.permute.xlu0 %418
    %422 = vset.pattern.permute.xlu0 0
    %423 = vperm.xlu0 %422, %v365
    %v424 = vpop.permute.xlu0 %423
    %427 = vset.pattern.permute.xlu0 0
    %428 = vperm.xlu0 %427, %v366
    %v429 = vpop.permute.xlu0 %428
    %432 = vset.pattern.permute.xlu0 0
    %433 = vperm.xlu0 %432, %v367
    %v434 = vpop.permute.xlu0 %433
    %437 = vset.pattern.permute.xlu0 0
    %438 = vperm.xlu0 %437, %v368
    %v439 = vpop.permute.xlu0 %438
    %442 = vset.pattern.permute.xlu0 0
    %443 = vperm.xlu0 %442, %v369
    %v444 = vpop.permute.xlu0 %443
    %447 = vset.pattern.permute.xlu0 0
    %448 = vperm.xlu0 %447, %v370
    %v449 = vpop.permute.xlu0 %448
    %v451 = vmul.f32 %v339, %v374
    %v452 = vmul.f32 %v340, %v379
    %v453 = vmul.f32 %v341, %v384
    %v454 = vmul.f32 %v342, %v389
    %v455 = vmul.f32 %v343, %v394
    %v456 = vmul.f32 %v344, %v399
    %v457 = vmul.f32 %v345, %v404
    %v458 = vmul.f32 %v346, %v409
    %v459 = vmul.f32 %v347, %v414
    %v460 = vmul.f32 %v348, %v419
    %v461 = vmul.f32 %v349, %v424
    %v462 = vmul.f32 %v350, %v429
    %v463 = vmul.f32 %v351, %v434
    %v464 = vmul.f32 %v352, %v439
    %v465 = vmul.f32 %v353, %v444
    %v466 = vmul.f32 %v354, %v449
    %v467 = vpack.c.bf16 %v452, %v451
    %v468 = vpack.c.bf16 %v454, %v453
    %v469 = vpack.c.bf16 %v456, %v455
    %v470 = vpack.c.bf16 %v458, %v457
    %v471 = vpack.c.bf16 %v460, %v459
    %v472 = vpack.c.bf16 %v462, %v461
    %v473 = vpack.c.bf16 %v464, %v463
    %v474 = vpack.c.bf16 %v466, %v465
    %v475 = vld [vmem:[%s4] sm:$0xf]
    %v476 = vld [vmem:[%s4 + $0x4] sm:$0xf]
    %v477 = vld [vmem:[%s4 + $0x8] sm:$0xf]
    %v478 = vld [vmem:[%s4 + $0xc] sm:$0xf]
    %v479 = vld [vmem:[%s4 + $0x10] sm:$0xf]
    %v480 = vld [vmem:[%s4 + $0x14] sm:$0xf]
    %v481 = vld [vmem:[%s4 + $0x18] sm:$0xf]
    %v482 = vld [vmem:[%s4 + $0x1c] sm:$0xf]
    %v483 = vld [vmem:[%s4 + $0x20] sm:$0xf]
    %v484 = vld [vmem:[%s4 + $0x24] sm:$0xf]
    %v485 = vld [vmem:[%s4 + $0x28] sm:$0xf]
    %v486 = vld [vmem:[%s4 + $0x2c] sm:$0xf]
    %v487 = vld [vmem:[%s4 + $0x30] sm:$0xf]
    %v488 = vld [vmem:[%s4 + $0x34] sm:$0xf]
    %v489 = vld [vmem:[%s4 + $0x38] sm:$0xf]
    %v490 = vld [vmem:[%s4 + $0x3c] sm:$0xf]
    %v491 = vld [vmem:[%s2] sm:$0xf]
    %v492 = vld [vmem:[%s2 + $0x4] sm:$0xf]
    %v493 = vld [vmem:[%s2 + $0x8] sm:$0xf]
    %v494 = vld [vmem:[%s2 + $0xc] sm:$0xf]
    %v495 = vld [vmem:[%s2 + $0x10] sm:$0xf]
    %v496 = vld [vmem:[%s2 + $0x14] sm:$0xf]
    %v497 = vld [vmem:[%s2 + $0x18] sm:$0xf]
    %v498 = vld [vmem:[%s2 + $0x1c] sm:$0xf]
    %v499 = vld [vmem:[%s2 + $0x20] sm:$0xf]
    %v500 = vld [vmem:[%s2 + $0x24] sm:$0xf]
    %v501 = vld [vmem:[%s2 + $0x28] sm:$0xf]
    %v502 = vld [vmem:[%s2 + $0x2c] sm:$0xf]
    %v503 = vld [vmem:[%s2 + $0x30] sm:$0xf]
    %v504 = vld [vmem:[%s2 + $0x34] sm:$0xf]
    %v505 = vld [vmem:[%s2 + $0x38] sm:$0xf]
    %v506 = vld [vmem:[%s2 + $0x3c] sm:$0xf]
    %v507 = vld [vmem:[%s5] sm:$0xf]
    %v508 = vld [vmem:[%s5 + $0x4] sm:$0xf]
    %v509 = vld [vmem:[%s5 + $0x8] sm:$0xf]
    %v510 = vld [vmem:[%s5 + $0xc] sm:$0xf]
    %v511 = vld [vmem:[%s5 + $0x10] sm:$0xf]
    %v512 = vld [vmem:[%s5 + $0x14] sm:$0xf]
    %v513 = vld [vmem:[%s5 + $0x18] sm:$0xf]
    %v514 = vld [vmem:[%s5 + $0x1c] sm:$0xf]
    %v515 = vld [vmem:[%s5 + $0x20] sm:$0xf]
    %v516 = vld [vmem:[%s5 + $0x24] sm:$0xf]
    %v517 = vld [vmem:[%s5 + $0x28] sm:$0xf]
    %v518 = vld [vmem:[%s5 + $0x2c] sm:$0xf]
    %v519 = vld [vmem:[%s5 + $0x30] sm:$0xf]
    %v520 = vld [vmem:[%s5 + $0x34] sm:$0xf]
    %v521 = vld [vmem:[%s5 + $0x38] sm:$0xf]
    %v522 = vld [vmem:[%s5 + $0x3c] sm:$0xf]
    %v539 = vunpack.c.l.b16 %v491
    %v540 = vunpack.c.l.b16 %v492
    %v541 = vunpack.c.l.b16 %v493
    %v542 = vunpack.c.l.b16 %v494
    %v543 = vunpack.c.l.b16 %v495
    %v544 = vunpack.c.l.b16 %v496
    %v545 = vunpack.c.l.b16 %v497
    %v546 = vunpack.c.l.b16 %v498
    %v547 = vunpack.c.l.b16 %v499
    %v548 = vunpack.c.l.b16 %v500
    %v549 = vunpack.c.l.b16 %v501
    %v550 = vunpack.c.l.b16 %v502
    %v551 = vunpack.c.l.b16 %v503
    %v552 = vunpack.c.l.b16 %v504
    %v553 = vunpack.c.l.b16 %v505
    %v554 = vunpack.c.l.b16 %v506
    %v555 = vpack.c.b16 %v540, %v539
    %v556 = vpack.c.b16 %v542, %v541
    %v557 = vpack.c.b16 %v544, %v543
    %v558 = vpack.c.b16 %v546, %v545
    %v559 = vpack.c.b16 %v548, %v547
    %v560 = vpack.c.b16 %v550, %v549
    %v561 = vpack.c.b16 %v552, %v551
    %v562 = vpack.c.b16 %v554, %v553
    %v587 = vunpack.c.l.b16 %v507
    %v588 = vunpack.c.l.b16 %v508
    %v589 = vunpack.c.l.b16 %v509
    %v590 = vunpack.c.l.b16 %v510
    %v591 = vunpack.c.l.b16 %v511
    %v592 = vunpack.c.l.b16 %v512
    %v593 = vunpack.c.l.b16 %v513
    %v594 = vunpack.c.l.b16 %v514
    %v595 = vunpack.c.l.b16 %v515
    %v596 = vunpack.c.l.b16 %v516
    %v597 = vunpack.c.l.b16 %v517
    %v598 = vunpack.c.l.b16 %v518
    %v599 = vunpack.c.l.b16 %v519
    %v600 = vunpack.c.l.b16 %v520
    %v601 = vunpack.c.l.b16 %v521
    %v602 = vunpack.c.l.b16 %v522
    %v603 = vpack.c.b16 %v588, %v587
    %v604 = vpack.c.b16 %v590, %v589
    %v605 = vpack.c.b16 %v592, %v591
    %v606 = vpack.c.b16 %v594, %v593
    %v607 = vpack.c.b16 %v596, %v595
    %v608 = vpack.c.b16 %v598, %v597
    %v609 = vpack.c.b16 %v600, %v599
    %v610 = vpack.c.b16 %v602, %v601
    %619 = vmatprep.subr.bf16.mxu0 0
    %620 = vmatpush1.bf16.msra.mxu0 %v603
    %621 = vmatprep.subr.bf16.mxu0 0
    %622 = vmatpush1.bf16.msra.mxu0 %v604
    %623 = vmatprep.subr.bf16.mxu0 0
    %624 = vmatpush1.bf16.msra.mxu0 %v605
    %625 = vmatprep.subr.bf16.mxu0 0
    %626 = vmatpush1.bf16.msra.mxu0 %v606
    %627 = vmatprep.subr.bf16.mxu0 0
    %628 = vmatpush1.bf16.msra.mxu0 %v607
    %629 = vmatprep.subr.bf16.mxu0 0
    %630 = vmatpush1.bf16.msra.mxu0 %v608
    %631 = vmatprep.subr.bf16.mxu0 0
    %632 = vmatpush1.bf16.msra.mxu0 %v609
    %633 = vmatprep.subr.bf16.mxu0 0
    %634 = vmatpush1.bf16.msra.mxu0 %v610
    %635 = vmatprep.subr.bf16.mxu0 0
    %636 = vmatpush1.bf16.msra.mxu0 0
    %637 = vmatprep.subr.bf16.mxu0 0
    %638 = vmatpush1.bf16.msra.mxu0 0
    %639 = vmatprep.subr.bf16.mxu0 0
    %640 = vmatpush1.bf16.msra.mxu0 0
    %641 = vmatprep.subr.bf16.mxu0 0
    %642 = vmatpush1.bf16.msra.mxu0 0
    %643 = vmatprep.subr.bf16.mxu0 0
    %644 = vmatpush1.bf16.msra.mxu0 0
    %645 = vmatprep.subr.bf16.mxu0 0
    %646 = vmatpush1.bf16.msra.mxu0 0
    %647 = vmatprep.subr.bf16.mxu0 0
    %648 = vmatpush1.bf16.msra.mxu0 0
    %649 = vmatprep.subr.bf16.mxu0 0
    %650 = vmatpush1.bf16.msra.mxu0 0
    %651 = vmatprep.mubr.bf16.mxu0 0
    %652 = vmatmul.mubr.bf16.gmra.mrb[0].mxu0 %v555
    %v653 = vpop.f32.mrb[0].mxu0
    %v654 = vadd.f32 0.0, %v653
    %v655 = vpop.f32.mrb[0].mxu0
    %v656 = vpop.f32.mrb[0].mxu0
    %v657 = vadd.f32 0.0, %v656
    %v658 = vpop.f32.mrb[0].mxu0
    %659 = vmatprep.mubr.bf16.mxu0 0
    %660 = vmatmul.mubr.bf16.gmra.mrb[0].mxu0 %v556
    %v661 = vpop.f32.mrb[0].mxu0
    %v662 = vadd.f32 0.0, %v661
    %v663 = vpop.f32.mrb[0].mxu0
    %v664 = vpop.f32.mrb[0].mxu0
    %v665 = vadd.f32 0.0, %v664
    %v666 = vpop.f32.mrb[0].mxu0
    %667 = vmatprep.mubr.bf16.mxu0 0
    %668 = vmatmul.mubr.bf16.gmra.mrb[0].mxu0 %v557
    %v669 = vpop.f32.mrb[0].mxu0
    %v670 = vadd.f32 0.0, %v669
    %v671 = vpop.f32.mrb[0].mxu0
    %v672 = vpop.f32.mrb[0].mxu0
    %v673 = vadd.f32 0.0, %v672
    %v674 = vpop.f32.mrb[0].mxu0
    %675 = vmatprep.mubr.bf16.mxu0 0
    %676 = vmatmul.mubr.bf16.gmra.mrb[0].mxu0 %v558
    %v677 = vpop.f32.mrb[0].mxu0
    %v678 = vadd.f32 0.0, %v677
    %v679 = vpop.f32.mrb[0].mxu0
    %v680 = vpop.f32.mrb[0].mxu0
    %v681 = vadd.f32 0.0, %v680
    %v682 = vpop.f32.mrb[0].mxu0
    %683 = vmatprep.mubr.bf16.mxu0 0
    %684 = vmatmul.mubr.bf16.gmra.mrb[0].mxu0 %v559
    %v685 = vpop.f32.mrb[0].mxu0
    %v686 = vadd.f32 0.0, %v685
    %v687 = vpop.f32.mrb[0].mxu0
    %v688 = vpop.f32.mrb[0].mxu0
    %v689 = vadd.f32 0.0, %v688
    %v690 = vpop.f32.mrb[0].mxu0
    %691 = vmatprep.mubr.bf16.mxu0 0
    %692 = vmatmul.mubr.bf16.gmra.mrb[0].mxu0 %v560
    %v693 = vpop.f32.mrb[0].mxu0
    %v694 = vadd.f32 0.0, %v693
    %v695 = vpop.f32.mrb[0].mxu0
    %v696 = vpop.f32.mrb[0].mxu0
    %v697 = vadd.f32 0.0, %v696
    %v698 = vpop.f32.mrb[0].mxu0
    %699 = vmatprep.mubr.bf16.mxu0 0
    %700 = vmatmul.mubr.bf16.gmra.mrb[0].mxu0 %v561
    %v701 = vpop.f32.mrb[0].mxu0
    %v702 = vadd.f32 0.0, %v701
    %v703 = vpop.f32.mrb[0].mxu0
    %v704 = vpop.f32.mrb[0].mxu0
    %v705 = vadd.f32 0.0, %v704
    %v706 = vpop.f32.mrb[0].mxu0
    %707 = vmatprep.mubr.bf16.mxu0 0
    %708 = vmatmul.mubr.bf16.gmra.mrb[0].mxu0 %v562
    %v709 = vpop.f32.mrb[0].mxu0
    %v710 = vadd.f32 0.0, %v709
    %v711 = vpop.f32.mrb[0].mxu0
    %v712 = vpop.f32.mrb[0].mxu0
    %v713 = vadd.f32 0.0, %v712
    %v714 = vpop.f32.mrb[0].mxu0
    %715 = vdwg.mxu0
    %v732 = vunpack.c.l.b16 %v475
    %v733 = vunpack.c.l.b16 %v476
    %v734 = vunpack.c.l.b16 %v477
    %v735 = vunpack.c.l.b16 %v478
    %v736 = vunpack.c.l.b16 %v479
    %v737 = vunpack.c.l.b16 %v480
    %v738 = vunpack.c.l.b16 %v481
    %v739 = vunpack.c.l.b16 %v482
    %v740 = vunpack.c.l.b16 %v483
    %v741 = vunpack.c.l.b16 %v484
    %v742 = vunpack.c.l.b16 %v485
    %v743 = vunpack.c.l.b16 %v486
    %v744 = vunpack.c.l.b16 %v487
    %v745 = vunpack.c.l.b16 %v488
    %v746 = vunpack.c.l.b16 %v489
    %v747 = vunpack.c.l.b16 %v490
    %v748 = vpack.c.b16 %v733, %v732
    %v749 = vpack.c.b16 %v735, %v734
    %v750 = vpack.c.b16 %v737, %v736
    %v751 = vpack.c.b16 %v739, %v738
    %v752 = vpack.c.b16 %v741, %v740
    %v753 = vpack.c.b16 %v743, %v742
    %v754 = vpack.c.b16 %v745, %v744
    %v755 = vpack.c.b16 %v747, %v746
    %764 = vmatprep.subr.bf16.mxu0 0
    %765 = vmatpush1.bf16.msra.mxu0 %v748
    %766 = vmatprep.subr.bf16.mxu0 0
    %767 = vmatpush1.bf16.msra.mxu0 %v749
    %768 = vmatprep.subr.bf16.mxu0 0
    %769 = vmatpush1.bf16.msra.mxu0 %v750
    %770 = vmatprep.subr.bf16.mxu0 0
    %771 = vmatpush1.bf16.msra.mxu0 %v751
    %772 = vmatprep.subr.bf16.mxu0 0
    %773 = vmatpush1.bf16.msra.mxu0 %v752
    %774 = vmatprep.subr.bf16.mxu0 0
    %775 = vmatpush1.bf16.msra.mxu0 %v753
    %776 = vmatprep.subr.bf16.mxu0 0
    %777 = vmatpush1.bf16.msra.mxu0 %v754
    %778 = vmatprep.subr.bf16.mxu0 0
    %779 = vmatpush1.bf16.msra.mxu0 %v755
    %780 = vmatprep.subr.bf16.mxu0 0
    %781 = vmatpush1.bf16.msra.mxu0 0
    %782 = vmatprep.subr.bf16.mxu0 0
    %783 = vmatpush1.bf16.msra.mxu0 0
    %784 = vmatprep.subr.bf16.mxu0 0
    %785 = vmatpush1.bf16.msra.mxu0 0
    %786 = vmatprep.subr.bf16.mxu0 0
    %787 = vmatpush1.bf16.msra.mxu0 0
    %788 = vmatprep.subr.bf16.mxu0 0
    %789 = vmatpush1.bf16.msra.mxu0 0
    %790 = vmatprep.subr.bf16.mxu0 0
    %791 = vmatpush1.bf16.msra.mxu0 0
    %792 = vmatprep.subr.bf16.mxu0 0
    %793 = vmatpush1.bf16.msra.mxu0 0
    %794 = vmatprep.subr.bf16.mxu0 0
    %795 = vmatpush1.bf16.msra.mxu0 0
    %796 = vmatprep.mubr.bf16.mxu0 0
    %797 = vmatmul.mubr.bf16.gmra.mrb[0].mxu0 %v467
    %v798 = vpop.f32.mrb[0].mxu0
    %v799 = vadd.f32 %v654, %v798
    %v800 = vpop.f32.mrb[0].mxu0
    %v801 = vpop.f32.mrb[0].mxu0
    %v802 = vadd.f32 %v657, %v801
    %v803 = vpop.f32.mrb[0].mxu0
    %804 = vmatprep.mubr.bf16.mxu0 0
    %805 = vmatmul.mubr.bf16.gmra.mrb[0].mxu0 %v468
    %v806 = vpop.f32.mrb[0].mxu0
    %v807 = vadd.f32 %v662, %v806
    %v808 = vpop.f32.mrb[0].mxu0
    %v809 = vpop.f32.mrb[0].mxu0
    %v810 = vadd.f32 %v665, %v809
    %v811 = vpop.f32.mrb[0].mxu0
    %812 = vmatprep.mubr.bf16.mxu0 0
    %813 = vmatmul.mubr.bf16.gmra.mrb[0].mxu0 %v469
    %v814 = vpop.f32.mrb[0].mxu0
    %v815 = vadd.f32 %v670, %v814
    %v816 = vpop.f32.mrb[0].mxu0
    %v817 = vpop.f32.mrb[0].mxu0
    %v818 = vadd.f32 %v673, %v817
    %v819 = vpop.f32.mrb[0].mxu0
    %820 = vmatprep.mubr.bf16.mxu0 0
    %821 = vmatmul.mubr.bf16.gmra.mrb[0].mxu0 %v470
    %v822 = vpop.f32.mrb[0].mxu0
    %v823 = vadd.f32 %v678, %v822
    %v824 = vpop.f32.mrb[0].mxu0
    %v825 = vpop.f32.mrb[0].mxu0
    %v826 = vadd.f32 %v681, %v825
    %v827 = vpop.f32.mrb[0].mxu0
    %828 = vmatprep.mubr.bf16.mxu0 0
    %829 = vmatmul.mubr.bf16.gmra.mrb[0].mxu0 %v471
    %v830 = vpop.f32.mrb[0].mxu0
    %v831 = vadd.f32 %v686, %v830
    %v832 = vpop.f32.mrb[0].mxu0
    %v833 = vpop.f32.mrb[0].mxu0
    %v834 = vadd.f32 %v689, %v833
    %v835 = vpop.f32.mrb[0].mxu0
    %836 = vmatprep.mubr.bf16.mxu0 0
    %837 = vmatmul.mubr.bf16.gmra.mrb[0].mxu0 %v472
    %v838 = vpop.f32.mrb[0].mxu0
    %v839 = vadd.f32 %v694, %v838
    %v840 = vpop.f32.mrb[0].mxu0
    %v841 = vpop.f32.mrb[0].mxu0
    %v842 = vadd.f32 %v697, %v841
    %v843 = vpop.f32.mrb[0].mxu0
    %844 = vmatprep.mubr.bf16.mxu0 0
    %845 = vmatmul.mubr.bf16.gmra.mrb[0].mxu0 %v473
    %v846 = vpop.f32.mrb[0].mxu0
    %v847 = vadd.f32 %v702, %v846
    %v848 = vpop.f32.mrb[0].mxu0
    %v849 = vpop.f32.mrb[0].mxu0
    %v850 = vadd.f32 %v705, %v849
    %v851 = vpop.f32.mrb[0].mxu0
    %852 = vmatprep.mubr.bf16.mxu0 0
    %853 = vmatmul.mubr.bf16.gmra.mrb[0].mxu0 %v474
    %v854 = vpop.f32.mrb[0].mxu0
    %v855 = vadd.f32 %v710, %v854
    %v856 = vpop.f32.mrb[0].mxu0
    %v857 = vpop.f32.mrb[0].mxu0
    %v858 = vadd.f32 %v713, %v857
    %v859 = vpop.f32.mrb[0].mxu0
    %860 = vdwg.mxu0
    %v861 = vld [vmem:[%s6] sm:$0x1]
    %v863 = vlaneseq
    %v864 = vshrl.u32 %v863, 7
    %v865 = vsub.s32 0, %v864
    %v866 = vrot.slane %v861, %v865
    %v868 = vadd.f32 %v799, %v866
    %v869 = vadd.f32 %v802, %v866
    %v870 = vadd.f32 %v807, %v866
    %v871 = vadd.f32 %v810, %v866
    %v872 = vadd.f32 %v815, %v866
    %v873 = vadd.f32 %v818, %v866
    %v874 = vadd.f32 %v823, %v866
    %v875 = vadd.f32 %v826, %v866
    %v876 = vadd.f32 %v831, %v866
    %v877 = vadd.f32 %v834, %v866
    %v878 = vadd.f32 %v839, %v866
    %v879 = vadd.f32 %v842, %v866
    %v880 = vadd.f32 %v847, %v866
    %v881 = vadd.f32 %v850, %v866
    %v882 = vadd.f32 %v855, %v866
    %v883 = vadd.f32 %v858, %v866
    %884 = vst [vmem:[%s7] sm:$0xff] %v868
    %885 = vst [vmem:[%s7 + $0x8] sm:$0xff] %v869
    %886 = vst [vmem:[%s7 + $0x10] sm:$0xff] %v870
    %887 = vst [vmem:[%s7 + $0x18] sm:$0xff] %v871
    %888 = vst [vmem:[%s7 + $0x20] sm:$0xff] %v872
    %889 = vst [vmem:[%s7 + $0x28] sm:$0xff] %v873
    %890 = vst [vmem:[%s7 + $0x30] sm:$0xff] %v874
    %891 = vst [vmem:[%s7 + $0x38] sm:$0xff] %v875
    %892 = vst [vmem:[%s7 + $0x40] sm:$0xff] %v876
    %893 = vst [vmem:[%s7 + $0x48] sm:$0xff] %v877
    %894 = vst [vmem:[%s7 + $0x50] sm:$0xff] %v878
    %895 = vst [vmem:[%s7 + $0x58] sm:$0xff] %v879
    %896 = vst [vmem:[%s7 + $0x60] sm:$0xff] %v880
    %897 = vst [vmem:[%s7 + $0x68] sm:$0xff] %v881
    %898 = vst [vmem:[%s7 + $0x70] sm:$0xff] %v882
    %899 = vst [vmem:[%s7 + $0x78] sm:$0xff] %v883
  $region37: #{graphsage_forward.3} parent=0 // pred_fallthru
    _
  // Predicated region
  $region38: #{graphsage_forward.3} parent=0 // pred_check
    _
  $region39: #{graphsage_forward.3} parent=0 // pred_check_branch
    %901 = sbr.rel (0) target = $region41
  $region40: #{graphsage_forward.3} parent=0 // pred_region
    _
  $region41: #{graphsage_forward.3} parent=0 // pred_fallthru
    _
  // Predicated region
  $region42: #{graphsage_forward.3} parent=0 // pred_check
    _
  $region43: #{graphsage_forward.3} parent=0 // pred_check_branch
    %903 = sbr.rel (0) target = $region45
  $region44: #{graphsage_forward.3} parent=0 // pred_region
    _
  $region45: #{graphsage_forward.3} parent=0 // pred_fallthru
    _

// kernel: graphsage_forward.2
$region0: #{graphsage_forward.2}
  #allocation0 [shape = 'u32[]', space=smem, size = 0x4, offset = 0x4, fixed_abs, tag = 'smem constant byte address 0x4 - core index']
  #allocation1 [shape = 'u32[144,128]{1,0:T(1,128)}', space=vmem, size = 0x12000, scoped, tag = 'internal scratch']
  #allocation2 [shape = 'f32[128,128]{1,0:T(8,128)}', space=vmem, size = 0x10000, scoped, tag = 'scratch operand']
  %s0 = inlined_call_operand.vmem [shape: s8[128,128], index: 0, kind: input, shape index: {}]
  %s1 = inlined_call_operand.vmem [shape: bf16[128,128], index: 1, kind: input, shape index: {}, may-alias: {1,2}]
  %s2 = inlined_call_operand.vmem [shape: bf16[128,128], index: 2, kind: input, shape index: {}, may-alias: {1,2}]
  %s3 = inlined_call_operand.vmem [shape: f32[128,1], index: 3, kind: input, shape index: {}]
  %s4 = inlined_call_operand.vmem [shape: bf16[128,128], index: 4, kind: input, shape index: {}]
  %s5 = inlined_call_operand.vmem [shape: bf16[128,128], index: 5, kind: input, shape index: {}]
  %s6 = inlined_call_operand.vmem [shape: f32[1,128], index: 6, kind: input, shape index: {}]
  %s7 = inlined_call_operand.vmem [shape: bf16[128,128], index: 7, kind: output, shape index: {}]
  %s8 = sld [smem:[#allocation0]]
  $region46: #{graphsage_forward.2} parent=0
    _
  %s10 = ssub.s32 1, %s8
  %s11 = scalar_select 0, %s10, %s8
  // Predicated region
  $region2: #{graphsage_forward.2} parent=0 // pred_check
    _
  $region3: #{graphsage_forward.2} parent=0 // pred_check_branch
    %13 = sbr.rel (0) target = $region5
  $region4: #{graphsage_forward.2} parent=0 // pred_region
    _
  $region5: #{graphsage_forward.2} parent=0 // pred_fallthru
    _
  // Predicated region
  $region6: #{graphsage_forward.2} parent=0 // pred_check
    _
  $region7: #{graphsage_forward.2} parent=0 // pred_check_branch
    %15 = sbr.rel (0) target = $region9
  $region8: #{graphsage_forward.2} parent=0 // pred_region
    _
  $region9: #{graphsage_forward.2} parent=0 // pred_fallthru
    _
  // Predicated region
  $region10: #{graphsage_forward.2} parent=0 // pred_check
    _
  $region11: #{graphsage_forward.2} parent=0 // pred_check_branch
    %17 = sbr.rel (0) target = $region13
  $region12: #{graphsage_forward.2} parent=0 // pred_region
    _
  $region13: #{graphsage_forward.2} parent=0 // pred_fallthru
    _
  // Predicated region
  $region14: #{graphsage_forward.2} parent=0 // pred_check
    _
  $region15: #{graphsage_forward.2} parent=0 // pred_check_branch
    %19 = sbr.rel (0) target = $region17
  $region16: #{graphsage_forward.2} parent=0 // pred_region
    _
  $region17: #{graphsage_forward.2} parent=0 // pred_fallthru
    _
  // Predicated region
  $region18: #{graphsage_forward.2} parent=0 // pred_check
    _
  $region19: #{graphsage_forward.2} parent=0 // pred_check_branch
    %21 = sbr.rel (0) target = $region21
  $region20: #{graphsage_forward.2} parent=0 // pred_region
    _
  $region21: #{graphsage_forward.2} parent=0 // pred_fallthru
    _
  // Predicated region
  $region22: #{graphsage_forward.2} parent=0 // pred_check
    _
  $region23: #{graphsage_forward.2} parent=0 // pred_check_branch
    %23 = sbr.rel (0) target = $region25
  $region24: #{graphsage_forward.2} parent=0 // pred_region
    _
  $region25: #{graphsage_forward.2} parent=0 // pred_fallthru
    _
  // Predicated region
  $region26: #{graphsage_forward.2} parent=0 // pred_check
    _
  $region27: #{graphsage_forward.2} parent=0 // pred_check_branch
    %25 = sbr.rel (0) target = $region29
  $region28: #{graphsage_forward.2} parent=0 // pred_region
    _
  $region29: #{graphsage_forward.2} parent=0 // pred_fallthru
    _
  %p27 = scmp.eq.s32.totalorder 0, 0
  // Predicated region
  $region30: #{graphsage_forward.2} parent=0 // pred_check
    %p28 = pneg %p27
  $region31: #{graphsage_forward.2} parent=0 // pred_check_branch
    %30 = sbr.rel (%p28) target = $region33
  $region32: #{graphsage_forward.2} parent=0 // pred_region
    %31 = vst [vmem:[#allocation2] sm:$0xff] 0.0
    %32 = vst [vmem:[#allocation2 + $0x8] sm:$0xff] 0.0
    %33 = vst [vmem:[#allocation2 + $0x10] sm:$0xff] 0.0
    %34 = vst [vmem:[#allocation2 + $0x18] sm:$0xff] 0.0
    %35 = vst [vmem:[#allocation2 + $0x20] sm:$0xff] 0.0
    %36 = vst [vmem:[#allocation2 + $0x28] sm:$0xff] 0.0
    %37 = vst [vmem:[#allocation2 + $0x30] sm:$0xff] 0.0
    %38 = vst [vmem:[#allocation2 + $0x38] sm:$0xff] 0.0
    %39 = vst [vmem:[#allocation2 + $0x40] sm:$0xff] 0.0
    %40 = vst [vmem:[#allocation2 + $0x48] sm:$0xff] 0.0
    %41 = vst [vmem:[#allocation2 + $0x50] sm:$0xff] 0.0
    %42 = vst [vmem:[#allocation2 + $0x58] sm:$0xff] 0.0
    %43 = vst [vmem:[#allocation2 + $0x60] sm:$0xff] 0.0
    %44 = vst [vmem:[#allocation2 + $0x68] sm:$0xff] 0.0
    %45 = vst [vmem:[#allocation2 + $0x70] sm:$0xff] 0.0
    %46 = vst [vmem:[#allocation2 + $0x78] sm:$0xff] 0.0
  $region33: #{graphsage_forward.2} parent=0 // pred_fallthru
    _
  %v47 = vld [vmem:[#allocation2] sm:$0xff]
  %v48 = vld [vmem:[#allocation2 + $0x8] sm:$0xff]
  %v49 = vld [vmem:[#allocation2 + $0x10] sm:$0xff]
  %v50 = vld [vmem:[#allocation2 + $0x18] sm:$0xff]
  %v51 = vld [vmem:[#allocation2 + $0x20] sm:$0xff]
  %v52 = vld [vmem:[#allocation2 + $0x28] sm:$0xff]
  %v53 = vld [vmem:[#allocation2 + $0x30] sm:$0xff]
  %v54 = vld [vmem:[#allocation2 + $0x38] sm:$0xff]
  %v55 = vld [vmem:[#allocation2 + $0x40] sm:$0xff]
  %v56 = vld [vmem:[#allocation2 + $0x48] sm:$0xff]
  %v57 = vld [vmem:[#allocation2 + $0x50] sm:$0xff]
  %v58 = vld [vmem:[#allocation2 + $0x58] sm:$0xff]
  %v59 = vld [vmem:[#allocation2 + $0x60] sm:$0xff]
  %v60 = vld [vmem:[#allocation2 + $0x68] sm:$0xff]
  %v61 = vld [vmem:[#allocation2 + $0x70] sm:$0xff]
  %v62 = vld [vmem:[#allocation2 + $0x78] sm:$0xff]
  %v63 = vld [vmem:[%s0] sm:$0x3]
  %v64 = vld [vmem:[%s0 + $0x2] sm:$0x3]
  %v65 = vld [vmem:[%s0 + $0x4] sm:$0x3]
  %v66 = vld [vmem:[%s0 + $0x6] sm:$0x3]
  %v67 = vld [vmem:[%s0 + $0x8] sm:$0x3]
  %v68 = vld [vmem:[%s0 + $0xa] sm:$0x3]
  %v69 = vld [vmem:[%s0 + $0xc] sm:$0x3]
  %v70 = vld [vmem:[%s0 + $0xe] sm:$0x3]
  %v71 = vld [vmem:[%s0 + $0x10] sm:$0x3]
  %v72 = vld [vmem:[%s0 + $0x12] sm:$0x3]
  %v73 = vld [vmem:[%s0 + $0x14] sm:$0x3]
  %v74 = vld [vmem:[%s0 + $0x16] sm:$0x3]
  %v75 = vld [vmem:[%s0 + $0x18] sm:$0x3]
  %v76 = vld [vmem:[%s0 + $0x1a] sm:$0x3]
  %v77 = vld [vmem:[%s0 + $0x1c] sm:$0x3]
  %v78 = vld [vmem:[%s0 + $0x1e] sm:$0x3]
  %v79 = vunpack.c.l.s8.bf16 %v63
  %v80 = vunpack.c.l.s8.bf16 %v64
  %v81 = vunpack.c.l.s8.bf16 %v65
  %v82 = vunpack.c.l.s8.bf16 %v66
  %v83 = vunpack.c.l.s8.bf16 %v67
  %v84 = vunpack.c.l.s8.bf16 %v68
  %v85 = vunpack.c.l.s8.bf16 %v69
  %v86 = vunpack.c.l.s8.bf16 %v70
  %v87 = vunpack.c.l.s8.bf16 %v71
  %v88 = vunpack.c.l.s8.bf16 %v72
  %v89 = vunpack.c.l.s8.bf16 %v73
  %v90 = vunpack.c.l.s8.bf16 %v74
  %v91 = vunpack.c.l.s8.bf16 %v75
  %v92 = vunpack.c.l.s8.bf16 %v76
  %v93 = vunpack.c.l.s8.bf16 %v77
  %v94 = vunpack.c.l.s8.bf16 %v78
  %v95 = vld [vmem:[%s1] sm:$0xf]
  %v96 = vld [vmem:[%s1 + $0x4] sm:$0xf]
  %v97 = vld [vmem:[%s1 + $0x8] sm:$0xf]
  %v98 = vld [vmem:[%s1 + $0xc] sm:$0xf]
  %v99 = vld [vmem:[%s1 + $0x10] sm:$0xf]
  %v100 = vld [vmem:[%s1 + $0x14] sm:$0xf]
  %v101 = vld [vmem:[%s1 + $0x18] sm:$0xf]
  %v102 = vld [vmem:[%s1 + $0x1c] sm:$0xf]
  %v103 = vld [vmem:[%s1 + $0x20] sm:$0xf]
  %v104 = vld [vmem:[%s1 + $0x24] sm:$0xf]
  %v105 = vld [vmem:[%s1 + $0x28] sm:$0xf]
  %v106 = vld [vmem:[%s1 + $0x2c] sm:$0xf]
  %v107 = vld [vmem:[%s1 + $0x30] sm:$0xf]
  %v108 = vld [vmem:[%s1 + $0x34] sm:$0xf]
  %v109 = vld [vmem:[%s1 + $0x38] sm:$0xf]
  %v110 = vld [vmem:[%s1 + $0x3c] sm:$0xf]
  %v127 = vunpack.c.l.b16 %v79
  %v128 = vunpack.c.l.b16 %v80
  %v129 = vunpack.c.l.b16 %v81
  %v130 = vunpack.c.l.b16 %v82
  %v131 = vunpack.c.l.b16 %v83
  %v132 = vunpack.c.l.b16 %v84
  %v133 = vunpack.c.l.b16 %v85
  %v134 = vunpack.c.l.b16 %v86
  %v135 = vunpack.c.l.b16 %v87
  %v136 = vunpack.c.l.b16 %v88
  %v137 = vunpack.c.l.b16 %v89
  %v138 = vunpack.c.l.b16 %v90
  %v139 = vunpack.c.l.b16 %v91
  %v140 = vunpack.c.l.b16 %v92
  %v141 = vunpack.c.l.b16 %v93
  %v142 = vunpack.c.l.b16 %v94
  %v143 = vpack.c.b16 %v128, %v127
  %v144 = vpack.c.b16 %v130, %v129
  %v145 = vpack.c.b16 %v132, %v131
  %v146 = vpack.c.b16 %v134, %v133
  %v147 = vpack.c.b16 %v136, %v135
  %v148 = vpack.c.b16 %v138, %v137
  %v149 = vpack.c.b16 %v140, %v139
  %v150 = vpack.c.b16 %v142, %v141
  %v175 = vunpack.c.l.b16 %v95
  %v176 = vunpack.c.l.b16 %v96
  %v177 = vunpack.c.l.b16 %v97
  %v178 = vunpack.c.l.b16 %v98
  %v179 = vunpack.c.l.b16 %v99
  %v180 = vunpack.c.l.b16 %v100
  %v181 = vunpack.c.l.b16 %v101
  %v182 = vunpack.c.l.b16 %v102
  %v183 = vunpack.c.l.b16 %v103
  %v184 = vunpack.c.l.b16 %v104
  %v185 = vunpack.c.l.b16 %v105
  %v186 = vunpack.c.l.b16 %v106
  %v187 = vunpack.c.l.b16 %v107
  %v188 = vunpack.c.l.b16 %v108
  %v189 = vunpack.c.l.b16 %v109
  %v190 = vunpack.c.l.b16 %v110
  %v191 = vpack.c.b16 %v176, %v175
  %v192 = vpack.c.b16 %v178, %v177
  %v193 = vpack.c.b16 %v180, %v179
  %v194 = vpack.c.b16 %v182, %v181
  %v195 = vpack.c.b16 %v184, %v183
  %v196 = vpack.c.b16 %v186, %v185
  %v197 = vpack.c.b16 %v188, %v187
  %v198 = vpack.c.b16 %v190, %v189
  %207 = vmatprep.subr.bf16.mxu0 0
  %208 = vmatpush1.bf16.msra.mxu0 %v191
  %209 = vmatprep.subr.bf16.mxu0 0
  %210 = vmatpush1.bf16.msra.mxu0 %v192
  %211 = vmatprep.subr.bf16.mxu0 0
  %212 = vmatpush1.bf16.msra.mxu0 %v193
  %213 = vmatprep.subr.bf16.mxu0 0
  %214 = vmatpush1.bf16.msra.mxu0 %v194
  %215 = vmatprep.subr.bf16.mxu0 0
  %216 = vmatpush1.bf16.msra.mxu0 %v195
  %217 = vmatprep.subr.bf16.mxu0 0
  %218 = vmatpush1.bf16.msra.mxu0 %v196
  %219 = vmatprep.subr.bf16.mxu0 0
  %220 = vmatpush1.bf16.msra.mxu0 %v197
  %221 = vmatprep.subr.bf16.mxu0 0
  %222 = vmatpush1.bf16.msra.mxu0 %v198
  %223 = vmatprep.subr.bf16.mxu0 0
  %224 = vmatpush1.bf16.msra.mxu0 0
  %225 = vmatprep.subr.bf16.mxu0 0
  %226 = vmatpush1.bf16.msra.mxu0 0
  %227 = vmatprep.subr.bf16.mxu0 0
  %228 = vmatpush1.bf16.msra.mxu0 0
  %229 = vmatprep.subr.bf16.mxu0 0
  %230 = vmatpush1.bf16.msra.mxu0 0
  %231 = vmatprep.subr.bf16.mxu0 0
  %232 = vmatpush1.bf16.msra.mxu0 0
  %233 = vmatprep.subr.bf16.mxu0 0
  %234 = vmatpush1.bf16.msra.mxu0 0
  %235 = vmatprep.subr.bf16.mxu0 0
  %236 = vmatpush1.bf16.msra.mxu0 0
  %237 = vmatprep.subr.bf16.mxu0 0
  %238 = vmatpush1.bf16.msra.mxu0 0
  %239 = vmatprep.mubr.bf16.mxu0 0
  %240 = vmatmul.mubr.bf16.gmra.mrb[0].mxu0 %v143
  %v241 = vpop.f32.mrb[0].mxu0
  %v242 = vadd.f32 0.0, %v241
  %v243 = vpop.f32.mrb[0].mxu0
  %v244 = vpop.f32.mrb[0].mxu0
  %v245 = vadd.f32 0.0, %v244
  %v246 = vpop.f32.mrb[0].mxu0
  %247 = vmatprep.mubr.bf16.mxu0 0
  %248 = vmatmul.mubr.bf16.gmra.mrb[0].mxu0 %v144
  %v249 = vpop.f32.mrb[0].mxu0
  %v250 = vadd.f32 0.0, %v249
  %v251 = vpop.f32.mrb[0].mxu0
  %v252 = vpop.f32.mrb[0].mxu0
  %v253 = vadd.f32 0.0, %v252
  %v254 = vpop.f32.mrb[0].mxu0
  %255 = vmatprep.mubr.bf16.mxu0 0
  %256 = vmatmul.mubr.bf16.gmra.mrb[0].mxu0 %v145
  %v257 = vpop.f32.mrb[0].mxu0
  %v258 = vadd.f32 0.0, %v257
  %v259 = vpop.f32.mrb[0].mxu0
  %v260 = vpop.f32.mrb[0].mxu0
  %v261 = vadd.f32 0.0, %v260
  %v262 = vpop.f32.mrb[0].mxu0
  %263 = vmatprep.mubr.bf16.mxu0 0
  %264 = vmatmul.mubr.bf16.gmra.mrb[0].mxu0 %v146
  %v265 = vpop.f32.mrb[0].mxu0
  %v266 = vadd.f32 0.0, %v265
  %v267 = vpop.f32.mrb[0].mxu0
  %v268 = vpop.f32.mrb[0].mxu0
  %v269 = vadd.f32 0.0, %v268
  %v270 = vpop.f32.mrb[0].mxu0
  %271 = vmatprep.mubr.bf16.mxu0 0
  %272 = vmatmul.mubr.bf16.gmra.mrb[0].mxu0 %v147
  %v273 = vpop.f32.mrb[0].mxu0
  %v274 = vadd.f32 0.0, %v273
  %v275 = vpop.f32.mrb[0].mxu0
  %v276 = vpop.f32.mrb[0].mxu0
  %v277 = vadd.f32 0.0, %v276
  %v278 = vpop.f32.mrb[0].mxu0
  %279 = vmatprep.mubr.bf16.mxu0 0
  %280 = vmatmul.mubr.bf16.gmra.mrb[0].mxu0 %v148
  %v281 = vpop.f32.mrb[0].mxu0
  %v282 = vadd.f32 0.0, %v281
  %v283 = vpop.f32.mrb[0].mxu0
  %v284 = vpop.f32.mrb[0].mxu0
  %v285 = vadd.f32 0.0, %v284
  %v286 = vpop.f32.mrb[0].mxu0
  %287 = vmatprep.mubr.bf16.mxu0 0
  %288 = vmatmul.mubr.bf16.gmra.mrb[0].mxu0 %v149
  %v289 = vpop.f32.mrb[0].mxu0
  %v290 = vadd.f32 0.0, %v289
  %v291 = vpop.f32.mrb[0].mxu0
  %v292 = vpop.f32.mrb[0].mxu0
  %v293 = vadd.f32 0.0, %v292
  %v294 = vpop.f32.mrb[0].mxu0
  %295 = vmatprep.mubr.bf16.mxu0 0
  %296 = vmatmul.mubr.bf16.gmra.mrb[0].mxu0 %v150
  %v297 = vpop.f32.mrb[0].mxu0
  %v298 = vadd.f32 0.0, %v297
  %v299 = vpop.f32.mrb[0].mxu0
  %v300 = vpop.f32.mrb[0].mxu0
  %v301 = vadd.f32 0.0, %v300
  %v302 = vpop.f32.mrb[0].mxu0
  %303 = vdwg.mxu0
  %v304 = vadd.f32 %v47, %v242
  %v305 = vadd.f32 %v48, %v245
  %v306 = vadd.f32 %v49, %v250
  %v307 = vadd.f32 %v50, %v253
  %v308 = vadd.f32 %v51, %v258
  %v309 = vadd.f32 %v52, %v261
  %v310 = vadd.f32 %v53, %v266
  %v311 = vadd.f32 %v54, %v269
  %v312 = vadd.f32 %v55, %v274
  %v313 = vadd.f32 %v56, %v277
  %v314 = vadd.f32 %v57, %v282
  %v315 = vadd.f32 %v58, %v285
  %v316 = vadd.f32 %v59, %v290
  %v317 = vadd.f32 %v60, %v293
  %v318 = vadd.f32 %v61, %v298
  %v319 = vadd.f32 %v62, %v301
  %320 = vst [vmem:[#allocation2] sm:$0xff] %v304
  %321 = vst [vmem:[#allocation2 + $0x8] sm:$0xff] %v305
  %322 = vst [vmem:[#allocation2 + $0x10] sm:$0xff] %v306
  %323 = vst [vmem:[#allocation2 + $0x18] sm:$0xff] %v307
  %324 = vst [vmem:[#allocation2 + $0x20] sm:$0xff] %v308
  %325 = vst [vmem:[#allocation2 + $0x28] sm:$0xff] %v309
  %326 = vst [vmem:[#allocation2 + $0x30] sm:$0xff] %v310
  %327 = vst [vmem:[#allocation2 + $0x38] sm:$0xff] %v311
  %328 = vst [vmem:[#allocation2 + $0x40] sm:$0xff] %v312
  %329 = vst [vmem:[#allocation2 + $0x48] sm:$0xff] %v313
  %330 = vst [vmem:[#allocation2 + $0x50] sm:$0xff] %v314
  %331 = vst [vmem:[#allocation2 + $0x58] sm:$0xff] %v315
  %332 = vst [vmem:[#allocation2 + $0x60] sm:$0xff] %v316
  %333 = vst [vmem:[#allocation2 + $0x68] sm:$0xff] %v317
  %334 = vst [vmem:[#allocation2 + $0x70] sm:$0xff] %v318
  %335 = vst [vmem:[#allocation2 + $0x78] sm:$0xff] %v319
  // Predicated region
  $region34: #{graphsage_forward.2} parent=0 // pred_check
    %p336 = pneg %p27
  $region35: #{graphsage_forward.2} parent=0 // pred_check_branch
    %338 = sbr.rel (%p336) target = $region37
  $region36: #{graphsage_forward.2} parent=0 // pred_region
    %v339 = vld [vmem:[#allocation2] sm:$0xff]
    %v340 = vld [vmem:[#allocation2 + $0x8] sm:$0xff]
    %v341 = vld [vmem:[#allocation2 + $0x10] sm:$0xff]
    %v342 = vld [vmem:[#allocation2 + $0x18] sm:$0xff]
    %v343 = vld [vmem:[#allocation2 + $0x20] sm:$0xff]
    %v344 = vld [vmem:[#allocation2 + $0x28] sm:$0xff]
    %v345 = vld [vmem:[#allocation2 + $0x30] sm:$0xff]
    %v346 = vld [vmem:[#allocation2 + $0x38] sm:$0xff]
    %v347 = vld [vmem:[#allocation2 + $0x40] sm:$0xff]
    %v348 = vld [vmem:[#allocation2 + $0x48] sm:$0xff]
    %v349 = vld [vmem:[#allocation2 + $0x50] sm:$0xff]
    %v350 = vld [vmem:[#allocation2 + $0x58] sm:$0xff]
    %v351 = vld [vmem:[#allocation2 + $0x60] sm:$0xff]
    %v352 = vld [vmem:[#allocation2 + $0x68] sm:$0xff]
    %v353 = vld [vmem:[#allocation2 + $0x70] sm:$0xff]
    %v354 = vld [vmem:[#allocation2 + $0x78] sm:$0xff]
    %v355 = vld [vmem:[%s3] sm:$0xff]
    %v356 = vld [vmem:[%s3 + $0x8] sm:$0xff]
    %v357 = vld [vmem:[%s3 + $0x10] sm:$0xff]
    %v358 = vld [vmem:[%s3 + $0x18] sm:$0xff]
    %v359 = vld [vmem:[%s3 + $0x20] sm:$0xff]
    %v360 = vld [vmem:[%s3 + $0x28] sm:$0xff]
    %v361 = vld [vmem:[%s3 + $0x30] sm:$0xff]
    %v362 = vld [vmem:[%s3 + $0x38] sm:$0xff]
    %v363 = vld [vmem:[%s3 + $0x40] sm:$0xff]
    %v364 = vld [vmem:[%s3 + $0x48] sm:$0xff]
    %v365 = vld [vmem:[%s3 + $0x50] sm:$0xff]
    %v366 = vld [vmem:[%s3 + $0x58] sm:$0xff]
    %v367 = vld [vmem:[%s3 + $0x60] sm:$0xff]
    %v368 = vld [vmem:[%s3 + $0x68] sm:$0xff]
    %v369 = vld [vmem:[%s3 + $0x70] sm:$0xff]
    %v370 = vld [vmem:[%s3 + $0x78] sm:$0xff]
    %372 = vset.pattern.permute.xlu0 0
    %373 = vperm.xlu0 %372, %v355
    %v374 = vpop.permute.xlu0 %373
    %377 = vset.pattern.permute.xlu0 0
    %378 = vperm.xlu0 %377, %v356
    %v379 = vpop.permute.xlu0 %378
    %382 = vset.pattern.permute.xlu0 0
    %383 = vperm.xlu0 %382, %v357
    %v384 = vpop.permute.xlu0 %383
    %387 = vset.pattern.permute.xlu0 0
    %388 = vperm.xlu0 %387, %v358
    %v389 = vpop.permute.xlu0 %388
    %392 = vset.pattern.permute.xlu0 0
    %393 = vperm.xlu0 %392, %v359
    %v394 = vpop.permute.xlu0 %393
    %397 = vset.pattern.permute.xlu0 0
    %398 = vperm.xlu0 %397, %v360
    %v399 = vpop.permute.xlu0 %398
    %402 = vset.pattern.permute.xlu0 0
    %403 = vperm.xlu0 %402, %v361
    %v404 = vpop.permute.xlu0 %403
    %407 = vset.pattern.permute.xlu0 0
    %408 = vperm.xlu0 %407, %v362
    %v409 = vpop.permute.xlu0 %408
    %412 = vset.pattern.permute.xlu0 0
    %413 = vperm.xlu0 %412, %v363
    %v414 = vpop.permute.xlu0 %413
    %417 = vset.pattern.permute.xlu0 0
    %418 = vperm.xlu0 %417, %v364
    %v419 = vpop.permute.xlu0 %418
    %422 = vset.pattern.permute.xlu0 0
    %423 = vperm.xlu0 %422, %v365
    %v424 = vpop.permute.xlu0 %423
    %427 = vset.pattern.permute.xlu0 0
    %428 = vperm.xlu0 %427, %v366
    %v429 = vpop.permute.xlu0 %428
    %432 = vset.pattern.permute.xlu0 0
    %433 = vperm.xlu0 %432, %v367
    %v434 = vpop.permute.xlu0 %433
    %437 = vset.pattern.permute.xlu0 0
    %438 = vperm.xlu0 %437, %v368
    %v439 = vpop.permute.xlu0 %438
    %442 = vset.pattern.permute.xlu0 0
    %443 = vperm.xlu0 %442, %v369
    %v444 = vpop.permute.xlu0 %443
    %447 = vset.pattern.permute.xlu0 0
    %448 = vperm.xlu0 %447, %v370
    %v449 = vpop.permute.xlu0 %448
    %v451 = vmul.f32 %v339, %v374
    %v452 = vmul.f32 %v340, %v379
    %v453 = vmul.f32 %v341, %v384
    %v454 = vmul.f32 %v342, %v389
    %v455 = vmul.f32 %v343, %v394
    %v456 = vmul.f32 %v344, %v399
    %v457 = vmul.f32 %v345, %v404
    %v458 = vmul.f32 %v346, %v409
    %v459 = vmul.f32 %v347, %v414
    %v460 = vmul.f32 %v348, %v419
    %v461 = vmul.f32 %v349, %v424
    %v462 = vmul.f32 %v350, %v429
    %v463 = vmul.f32 %v351, %v434
    %v464 = vmul.f32 %v352, %v439
    %v465 = vmul.f32 %v353, %v444
    %v466 = vmul.f32 %v354, %v449
    %v467 = vpack.c.bf16 %v452, %v451
    %v468 = vpack.c.bf16 %v454, %v453
    %v469 = vpack.c.bf16 %v456, %v455
    %v470 = vpack.c.bf16 %v458, %v457
    %v471 = vpack.c.bf16 %v460, %v459
    %v472 = vpack.c.bf16 %v462, %v461
    %v473 = vpack.c.bf16 %v464, %v463
    %v474 = vpack.c.bf16 %v466, %v465
    %v475 = vld [vmem:[%s4] sm:$0xf]
    %v476 = vld [vmem:[%s4 + $0x4] sm:$0xf]
    %v477 = vld [vmem:[%s4 + $0x8] sm:$0xf]
    %v478 = vld [vmem:[%s4 + $0xc] sm:$0xf]
    %v479 = vld [vmem:[%s4 + $0x10] sm:$0xf]
    %v480 = vld [vmem:[%s4 + $0x14] sm:$0xf]
    %v481 = vld [vmem:[%s4 + $0x18] sm:$0xf]
    %v482 = vld [vmem:[%s4 + $0x1c] sm:$0xf]
    %v483 = vld [vmem:[%s4 + $0x20] sm:$0xf]
    %v484 = vld [vmem:[%s4 + $0x24] sm:$0xf]
    %v485 = vld [vmem:[%s4 + $0x28] sm:$0xf]
    %v486 = vld [vmem:[%s4 + $0x2c] sm:$0xf]
    %v487 = vld [vmem:[%s4 + $0x30] sm:$0xf]
    %v488 = vld [vmem:[%s4 + $0x34] sm:$0xf]
    %v489 = vld [vmem:[%s4 + $0x38] sm:$0xf]
    %v490 = vld [vmem:[%s4 + $0x3c] sm:$0xf]
    %v491 = vld [vmem:[%s2] sm:$0xf]
    %v492 = vld [vmem:[%s2 + $0x4] sm:$0xf]
    %v493 = vld [vmem:[%s2 + $0x8] sm:$0xf]
    %v494 = vld [vmem:[%s2 + $0xc] sm:$0xf]
    %v495 = vld [vmem:[%s2 + $0x10] sm:$0xf]
    %v496 = vld [vmem:[%s2 + $0x14] sm:$0xf]
    %v497 = vld [vmem:[%s2 + $0x18] sm:$0xf]
    %v498 = vld [vmem:[%s2 + $0x1c] sm:$0xf]
    %v499 = vld [vmem:[%s2 + $0x20] sm:$0xf]
    %v500 = vld [vmem:[%s2 + $0x24] sm:$0xf]
    %v501 = vld [vmem:[%s2 + $0x28] sm:$0xf]
    %v502 = vld [vmem:[%s2 + $0x2c] sm:$0xf]
    %v503 = vld [vmem:[%s2 + $0x30] sm:$0xf]
    %v504 = vld [vmem:[%s2 + $0x34] sm:$0xf]
    %v505 = vld [vmem:[%s2 + $0x38] sm:$0xf]
    %v506 = vld [vmem:[%s2 + $0x3c] sm:$0xf]
    %v507 = vld [vmem:[%s5] sm:$0xf]
    %v508 = vld [vmem:[%s5 + $0x4] sm:$0xf]
    %v509 = vld [vmem:[%s5 + $0x8] sm:$0xf]
    %v510 = vld [vmem:[%s5 + $0xc] sm:$0xf]
    %v511 = vld [vmem:[%s5 + $0x10] sm:$0xf]
    %v512 = vld [vmem:[%s5 + $0x14] sm:$0xf]
    %v513 = vld [vmem:[%s5 + $0x18] sm:$0xf]
    %v514 = vld [vmem:[%s5 + $0x1c] sm:$0xf]
    %v515 = vld [vmem:[%s5 + $0x20] sm:$0xf]
    %v516 = vld [vmem:[%s5 + $0x24] sm:$0xf]
    %v517 = vld [vmem:[%s5 + $0x28] sm:$0xf]
    %v518 = vld [vmem:[%s5 + $0x2c] sm:$0xf]
    %v519 = vld [vmem:[%s5 + $0x30] sm:$0xf]
    %v520 = vld [vmem:[%s5 + $0x34] sm:$0xf]
    %v521 = vld [vmem:[%s5 + $0x38] sm:$0xf]
    %v522 = vld [vmem:[%s5 + $0x3c] sm:$0xf]
    %v539 = vunpack.c.l.b16 %v491
    %v540 = vunpack.c.l.b16 %v492
    %v541 = vunpack.c.l.b16 %v493
    %v542 = vunpack.c.l.b16 %v494
    %v543 = vunpack.c.l.b16 %v495
    %v544 = vunpack.c.l.b16 %v496
    %v545 = vunpack.c.l.b16 %v497
    %v546 = vunpack.c.l.b16 %v498
    %v547 = vunpack.c.l.b16 %v499
    %v548 = vunpack.c.l.b16 %v500
    %v549 = vunpack.c.l.b16 %v501
    %v550 = vunpack.c.l.b16 %v502
    %v551 = vunpack.c.l.b16 %v503
    %v552 = vunpack.c.l.b16 %v504
    %v553 = vunpack.c.l.b16 %v505
    %v554 = vunpack.c.l.b16 %v506
    %v555 = vpack.c.b16 %v540, %v539
    %v556 = vpack.c.b16 %v542, %v541
    %v557 = vpack.c.b16 %v544, %v543
    %v558 = vpack.c.b16 %v546, %v545
    %v559 = vpack.c.b16 %v548, %v547
    %v560 = vpack.c.b16 %v550, %v549
    %v561 = vpack.c.b16 %v552, %v551
    %v562 = vpack.c.b16 %v554, %v553
    %v587 = vunpack.c.l.b16 %v507
    %v588 = vunpack.c.l.b16 %v508
    %v589 = vunpack.c.l.b16 %v509
    %v590 = vunpack.c.l.b16 %v510
    %v591 = vunpack.c.l.b16 %v511
    %v592 = vunpack.c.l.b16 %v512
    %v593 = vunpack.c.l.b16 %v513
    %v594 = vunpack.c.l.b16 %v514
    %v595 = vunpack.c.l.b16 %v515
    %v596 = vunpack.c.l.b16 %v516
    %v597 = vunpack.c.l.b16 %v517
    %v598 = vunpack.c.l.b16 %v518
    %v599 = vunpack.c.l.b16 %v519
    %v600 = vunpack.c.l.b16 %v520
    %v601 = vunpack.c.l.b16 %v521
    %v602 = vunpack.c.l.b16 %v522
    %v603 = vpack.c.b16 %v588, %v587
    %v604 = vpack.c.b16 %v590, %v589
    %v605 = vpack.c.b16 %v592, %v591
    %v606 = vpack.c.b16 %v594, %v593
    %v607 = vpack.c.b16 %v596, %v595
    %v608 = vpack.c.b16 %v598, %v597
    %v609 = vpack.c.b16 %v600, %v599
    %v610 = vpack.c.b16 %v602, %v601
    %619 = vmatprep.subr.bf16.mxu0 0
    %620 = vmatpush1.bf16.msra.mxu0 %v603
    %621 = vmatprep.subr.bf16.mxu0 0
    %622 = vmatpush1.bf16.msra.mxu0 %v604
    %623 = vmatprep.subr.bf16.mxu0 0
    %624 = vmatpush1.bf16.msra.mxu0 %v605
    %625 = vmatprep.subr.bf16.mxu0 0
    %626 = vmatpush1.bf16.msra.mxu0 %v606
    %627 = vmatprep.subr.bf16.mxu0 0
    %628 = vmatpush1.bf16.msra.mxu0 %v607
    %629 = vmatprep.subr.bf16.mxu0 0
    %630 = vmatpush1.bf16.msra.mxu0 %v608
    %631 = vmatprep.subr.bf16.mxu0 0
    %632 = vmatpush1.bf16.msra.mxu0 %v609
    %633 = vmatprep.subr.bf16.mxu0 0
    %634 = vmatpush1.bf16.msra.mxu0 %v610
    %635 = vmatprep.subr.bf16.mxu0 0
    %636 = vmatpush1.bf16.msra.mxu0 0
    %637 = vmatprep.subr.bf16.mxu0 0
    %638 = vmatpush1.bf16.msra.mxu0 0
    %639 = vmatprep.subr.bf16.mxu0 0
    %640 = vmatpush1.bf16.msra.mxu0 0
    %641 = vmatprep.subr.bf16.mxu0 0
    %642 = vmatpush1.bf16.msra.mxu0 0
    %643 = vmatprep.subr.bf16.mxu0 0
    %644 = vmatpush1.bf16.msra.mxu0 0
    %645 = vmatprep.subr.bf16.mxu0 0
    %646 = vmatpush1.bf16.msra.mxu0 0
    %647 = vmatprep.subr.bf16.mxu0 0
    %648 = vmatpush1.bf16.msra.mxu0 0
    %649 = vmatprep.subr.bf16.mxu0 0
    %650 = vmatpush1.bf16.msra.mxu0 0
    %651 = vmatprep.mubr.bf16.mxu0 0
    %652 = vmatmul.mubr.bf16.gmra.mrb[0].mxu0 %v555
    %v653 = vpop.f32.mrb[0].mxu0
    %v654 = vadd.f32 0.0, %v653
    %v655 = vpop.f32.mrb[0].mxu0
    %v656 = vpop.f32.mrb[0].mxu0
    %v657 = vadd.f32 0.0, %v656
    %v658 = vpop.f32.mrb[0].mxu0
    %659 = vmatprep.mubr.bf16.mxu0 0
    %660 = vmatmul.mubr.bf16.gmra.mrb[0].mxu0 %v556
    %v661 = vpop.f32.mrb[0].mxu0
    %v662 = vadd.f32 0.0, %v661
    %v663 = vpop.f32.mrb[0].mxu0
    %v664 = vpop.f32.mrb[0].mxu0
    %v665 = vadd.f32 0.0, %v664
    %v666 = vpop.f32.mrb[0].mxu0
    %667 = vmatprep.mubr.bf16.mxu0 0
    %668 = vmatmul.mubr.bf16.gmra.mrb[0].mxu0 %v557
    %v669 = vpop.f32.mrb[0].mxu0
    %v670 = vadd.f32 0.0, %v669
    %v671 = vpop.f32.mrb[0].mxu0
    %v672 = vpop.f32.mrb[0].mxu0
    %v673 = vadd.f32 0.0, %v672
    %v674 = vpop.f32.mrb[0].mxu0
    %675 = vmatprep.mubr.bf16.mxu0 0
    %676 = vmatmul.mubr.bf16.gmra.mrb[0].mxu0 %v558
    %v677 = vpop.f32.mrb[0].mxu0
    %v678 = vadd.f32 0.0, %v677
    %v679 = vpop.f32.mrb[0].mxu0
    %v680 = vpop.f32.mrb[0].mxu0
    %v681 = vadd.f32 0.0, %v680
    %v682 = vpop.f32.mrb[0].mxu0
    %683 = vmatprep.mubr.bf16.mxu0 0
    %684 = vmatmul.mubr.bf16.gmra.mrb[0].mxu0 %v559
    %v685 = vpop.f32.mrb[0].mxu0
    %v686 = vadd.f32 0.0, %v685
    %v687 = vpop.f32.mrb[0].mxu0
    %v688 = vpop.f32.mrb[0].mxu0
    %v689 = vadd.f32 0.0, %v688
    %v690 = vpop.f32.mrb[0].mxu0
    %691 = vmatprep.mubr.bf16.mxu0 0
    %692 = vmatmul.mubr.bf16.gmra.mrb[0].mxu0 %v560
    %v693 = vpop.f32.mrb[0].mxu0
    %v694 = vadd.f32 0.0, %v693
    %v695 = vpop.f32.mrb[0].mxu0
    %v696 = vpop.f32.mrb[0].mxu0
    %v697 = vadd.f32 0.0, %v696
    %v698 = vpop.f32.mrb[0].mxu0
    %699 = vmatprep.mubr.bf16.mxu0 0
    %700 = vmatmul.mubr.bf16.gmra.mrb[0].mxu0 %v561
    %v701 = vpop.f32.mrb[0].mxu0
    %v702 = vadd.f32 0.0, %v701
    %v703 = vpop.f32.mrb[0].mxu0
    %v704 = vpop.f32.mrb[0].mxu0
    %v705 = vadd.f32 0.0, %v704
    %v706 = vpop.f32.mrb[0].mxu0
    %707 = vmatprep.mubr.bf16.mxu0 0
    %708 = vmatmul.mubr.bf16.gmra.mrb[0].mxu0 %v562
    %v709 = vpop.f32.mrb[0].mxu0
    %v710 = vadd.f32 0.0, %v709
    %v711 = vpop.f32.mrb[0].mxu0
    %v712 = vpop.f32.mrb[0].mxu0
    %v713 = vadd.f32 0.0, %v712
    %v714 = vpop.f32.mrb[0].mxu0
    %715 = vdwg.mxu0
    %v732 = vunpack.c.l.b16 %v475
    %v733 = vunpack.c.l.b16 %v476
    %v734 = vunpack.c.l.b16 %v477
    %v735 = vunpack.c.l.b16 %v478
    %v736 = vunpack.c.l.b16 %v479
    %v737 = vunpack.c.l.b16 %v480
    %v738 = vunpack.c.l.b16 %v481
    %v739 = vunpack.c.l.b16 %v482
    %v740 = vunpack.c.l.b16 %v483
    %v741 = vunpack.c.l.b16 %v484
    %v742 = vunpack.c.l.b16 %v485
    %v743 = vunpack.c.l.b16 %v486
    %v744 = vunpack.c.l.b16 %v487
    %v745 = vunpack.c.l.b16 %v488
    %v746 = vunpack.c.l.b16 %v489
    %v747 = vunpack.c.l.b16 %v490
    %v748 = vpack.c.b16 %v733, %v732
    %v749 = vpack.c.b16 %v735, %v734
    %v750 = vpack.c.b16 %v737, %v736
    %v751 = vpack.c.b16 %v739, %v738
    %v752 = vpack.c.b16 %v741, %v740
    %v753 = vpack.c.b16 %v743, %v742
    %v754 = vpack.c.b16 %v745, %v744
    %v755 = vpack.c.b16 %v747, %v746
    %764 = vmatprep.subr.bf16.mxu0 0
    %765 = vmatpush1.bf16.msra.mxu0 %v748
    %766 = vmatprep.subr.bf16.mxu0 0
    %767 = vmatpush1.bf16.msra.mxu0 %v749
    %768 = vmatprep.subr.bf16.mxu0 0
    %769 = vmatpush1.bf16.msra.mxu0 %v750
    %770 = vmatprep.subr.bf16.mxu0 0
    %771 = vmatpush1.bf16.msra.mxu0 %v751
    %772 = vmatprep.subr.bf16.mxu0 0
    %773 = vmatpush1.bf16.msra.mxu0 %v752
    %774 = vmatprep.subr.bf16.mxu0 0
    %775 = vmatpush1.bf16.msra.mxu0 %v753
    %776 = vmatprep.subr.bf16.mxu0 0
    %777 = vmatpush1.bf16.msra.mxu0 %v754
    %778 = vmatprep.subr.bf16.mxu0 0
    %779 = vmatpush1.bf16.msra.mxu0 %v755
    %780 = vmatprep.subr.bf16.mxu0 0
    %781 = vmatpush1.bf16.msra.mxu0 0
    %782 = vmatprep.subr.bf16.mxu0 0
    %783 = vmatpush1.bf16.msra.mxu0 0
    %784 = vmatprep.subr.bf16.mxu0 0
    %785 = vmatpush1.bf16.msra.mxu0 0
    %786 = vmatprep.subr.bf16.mxu0 0
    %787 = vmatpush1.bf16.msra.mxu0 0
    %788 = vmatprep.subr.bf16.mxu0 0
    %789 = vmatpush1.bf16.msra.mxu0 0
    %790 = vmatprep.subr.bf16.mxu0 0
    %791 = vmatpush1.bf16.msra.mxu0 0
    %792 = vmatprep.subr.bf16.mxu0 0
    %793 = vmatpush1.bf16.msra.mxu0 0
    %794 = vmatprep.subr.bf16.mxu0 0
    %795 = vmatpush1.bf16.msra.mxu0 0
    %796 = vmatprep.mubr.bf16.mxu0 0
    %797 = vmatmul.mubr.bf16.gmra.mrb[0].mxu0 %v467
    %v798 = vpop.f32.mrb[0].mxu0
    %v799 = vadd.f32 %v654, %v798
    %v800 = vpop.f32.mrb[0].mxu0
    %v801 = vpop.f32.mrb[0].mxu0
    %v802 = vadd.f32 %v657, %v801
    %v803 = vpop.f32.mrb[0].mxu0
    %804 = vmatprep.mubr.bf16.mxu0 0
    %805 = vmatmul.mubr.bf16.gmra.mrb[0].mxu0 %v468
    %v806 = vpop.f32.mrb[0].mxu0
    %v807 = vadd.f32 %v662, %v806
    %v808 = vpop.f32.mrb[0].mxu0
    %v809 = vpop.f32.mrb[0].mxu0
    %v810 = vadd.f32 %v665, %v809
    %v811 = vpop.f32.mrb[0].mxu0
    %812 = vmatprep.mubr.bf16.mxu0 0
    %813 = vmatmul.mubr.bf16.gmra.mrb[0].mxu0 %v469
    %v814 = vpop.f32.mrb[0].mxu0
    %v815 = vadd.f32 %v670, %v814
    %v816 = vpop.f32.mrb[0].mxu0
    %v817 = vpop.f32.mrb[0].mxu0
    %v818 = vadd.f32 %v673, %v817
    %v819 = vpop.f32.mrb[0].mxu0
    %820 = vmatprep.mubr.bf16.mxu0 0
    %821 = vmatmul.mubr.bf16.gmra.mrb[0].mxu0 %v470
    %v822 = vpop.f32.mrb[0].mxu0
    %v823 = vadd.f32 %v678, %v822
    %v824 = vpop.f32.mrb[0].mxu0
    %v825 = vpop.f32.mrb[0].mxu0
    %v826 = vadd.f32 %v681, %v825
    %v827 = vpop.f32.mrb[0].mxu0
    %828 = vmatprep.mubr.bf16.mxu0 0
    %829 = vmatmul.mubr.bf16.gmra.mrb[0].mxu0 %v471
    %v830 = vpop.f32.mrb[0].mxu0
    %v831 = vadd.f32 %v686, %v830
    %v832 = vpop.f32.mrb[0].mxu0
    %v833 = vpop.f32.mrb[0].mxu0
    %v834 = vadd.f32 %v689, %v833
    %v835 = vpop.f32.mrb[0].mxu0
    %836 = vmatprep.mubr.bf16.mxu0 0
    %837 = vmatmul.mubr.bf16.gmra.mrb[0].mxu0 %v472
    %v838 = vpop.f32.mrb[0].mxu0
    %v839 = vadd.f32 %v694, %v838
    %v840 = vpop.f32.mrb[0].mxu0
    %v841 = vpop.f32.mrb[0].mxu0
    %v842 = vadd.f32 %v697, %v841
    %v843 = vpop.f32.mrb[0].mxu0
    %844 = vmatprep.mubr.bf16.mxu0 0
    %845 = vmatmul.mubr.bf16.gmra.mrb[0].mxu0 %v473
    %v846 = vpop.f32.mrb[0].mxu0
    %v847 = vadd.f32 %v702, %v846
    %v848 = vpop.f32.mrb[0].mxu0
    %v849 = vpop.f32.mrb[0].mxu0
    %v850 = vadd.f32 %v705, %v849
    %v851 = vpop.f32.mrb[0].mxu0
    %852 = vmatprep.mubr.bf16.mxu0 0
    %853 = vmatmul.mubr.bf16.gmra.mrb[0].mxu0 %v474
    %v854 = vpop.f32.mrb[0].mxu0
    %v855 = vadd.f32 %v710, %v854
    %v856 = vpop.f32.mrb[0].mxu0
    %v857 = vpop.f32.mrb[0].mxu0
    %v858 = vadd.f32 %v713, %v857
    %v859 = vpop.f32.mrb[0].mxu0
    %860 = vdwg.mxu0
    %v861 = vld [vmem:[%s6] sm:$0x1]
    %v863 = vlaneseq
    %v864 = vshrl.u32 %v863, 7
    %v865 = vsub.s32 0, %v864
    %v866 = vrot.slane %v861, %v865
    %v868 = vadd.f32 %v799, %v866
    %v869 = vadd.f32 %v802, %v866
    %v870 = vadd.f32 %v807, %v866
    %v871 = vadd.f32 %v810, %v866
    %v872 = vadd.f32 %v815, %v866
    %v873 = vadd.f32 %v818, %v866
    %v874 = vadd.f32 %v823, %v866
    %v875 = vadd.f32 %v826, %v866
    %v876 = vadd.f32 %v831, %v866
    %v877 = vadd.f32 %v834, %v866
    %v878 = vadd.f32 %v839, %v866
    %v879 = vadd.f32 %v842, %v866
    %v880 = vadd.f32 %v847, %v866
    %v881 = vadd.f32 %v850, %v866
    %v882 = vadd.f32 %v855, %v866
    %v883 = vadd.f32 %v858, %v866
    %v884 = vmax.f32 %v868, 0.0
    %v885 = vmax.f32 %v869, 0.0
    %v886 = vmax.f32 %v870, 0.0
    %v887 = vmax.f32 %v871, 0.0
    %v888 = vmax.f32 %v872, 0.0
    %v889 = vmax.f32 %v873, 0.0
    %v890 = vmax.f32 %v874, 0.0
    %v891 = vmax.f32 %v875, 0.0
    %v892 = vmax.f32 %v876, 0.0
    %v893 = vmax.f32 %v877, 0.0
    %v894 = vmax.f32 %v878, 0.0
    %v895 = vmax.f32 %v879, 0.0
    %v896 = vmax.f32 %v880, 0.0
    %v897 = vmax.f32 %v881, 0.0
    %v898 = vmax.f32 %v882, 0.0
    %v899 = vmax.f32 %v883, 0.0
    %v900 = vpack.c.bf16 %v885, %v884
    %v901 = vpack.c.bf16 %v887, %v886
    %v902 = vpack.c.bf16 %v889, %v888
    %v903 = vpack.c.bf16 %v891, %v890
    %v904 = vpack.c.bf16 %v893, %v892
    %v905 = vpack.c.bf16 %v895, %v894
    %v906 = vpack.c.bf16 %v897, %v896
    %v907 = vpack.c.bf16 %v899, %v898
    %v916 = vunpack.c.l.b16 %v900
    %v917 = vunpack.c.h.b16 %v900
    %v918 = vunpack.c.l.b16 %v901
    %v919 = vunpack.c.h.b16 %v901
    %v920 = vunpack.c.l.b16 %v902
    %v921 = vunpack.c.h.b16 %v902
    %v922 = vunpack.c.l.b16 %v903
    %v923 = vunpack.c.h.b16 %v903
    %v924 = vunpack.c.l.b16 %v904
    %v925 = vunpack.c.h.b16 %v904
    %v926 = vunpack.c.l.b16 %v905
    %v927 = vunpack.c.h.b16 %v905
    %v928 = vunpack.c.l.b16 %v906
    %v929 = vunpack.c.h.b16 %v906
    %v930 = vunpack.c.l.b16 %v907
    %v931 = vunpack.c.h.b16 %v907
    %v932 = vpack.c.b16 %v916, %v916
    %v933 = vpack.c.b16 %v917, %v917
    %v934 = vpack.c.b16 %v918, %v918
    %v935 = vpack.c.b16 %v919, %v919
    %v936 = vpack.c.b16 %v920, %v920
    %v937 = vpack.c.b16 %v921, %v921
    %v938 = vpack.c.b16 %v922, %v922
    %v939 = vpack.c.b16 %v923, %v923
    %v940 = vpack.c.b16 %v924, %v924
    %v941 = vpack.c.b16 %v925, %v925
    %v942 = vpack.c.b16 %v926, %v926
    %v943 = vpack.c.b16 %v927, %v927
    %v944 = vpack.c.b16 %v928, %v928
    %v945 = vpack.c.b16 %v929, %v929
    %v946 = vpack.c.b16 %v930, %v930
    %v947 = vpack.c.b16 %v931, %v931
    %964 = vst [vmem:[%s7] sm:$0xf] %v932
    %965 = vst [vmem:[%s7 + $0x4] sm:$0xf] %v933
    %966 = vst [vmem:[%s7 + $0x8] sm:$0xf] %v934
    %967 = vst [vmem:[%s7 + $0xc] sm:$0xf] %v935
    %968 = vst [vmem:[%s7 + $0x10] sm:$0xf] %v936
    %969 = vst [vmem:[%s7 + $0x14] sm:$0xf] %v937
    %970 = vst [vmem:[%s7 + $0x18] sm:$0xf] %v938
    %971 = vst [vmem:[%s7 + $0x1c] sm:$0xf] %v939
    %972 = vst [vmem:[%s7 + $0x20] sm:$0xf] %v940
    %973 = vst [vmem:[%s7 + $0x24] sm:$0xf] %v941
    %974 = vst [vmem:[%s7 + $0x28] sm:$0xf] %v942
    %975 = vst [vmem:[%s7 + $0x2c] sm:$0xf] %v943
    %976 = vst [vmem:[%s7 + $0x30] sm:$0xf] %v944
    %977 = vst [vmem:[%s7 + $0x34] sm:$0xf] %v945
    %978 = vst [vmem:[%s7 + $0x38] sm:$0xf] %v946
    %979 = vst [vmem:[%s7 + $0x3c] sm:$0xf] %v947
  $region37: #{graphsage_forward.2} parent=0 // pred_fallthru
    _
  // Predicated region
  $region38: #{graphsage_forward.2} parent=0 // pred_check
    _
  $region39: #{graphsage_forward.2} parent=0 // pred_check_branch
    %981 = sbr.rel (0) target = $region41
  $region40: #{graphsage_forward.2} parent=0 // pred_region
    _
  $region41: #{graphsage_forward.2} parent=0 // pred_fallthru
    _
  // Predicated region
  $region42: #{graphsage_forward.2} parent=0 // pred_check
    _
  $region43: #{graphsage_forward.2} parent=0 // pred_check_branch
    %983 = sbr.rel (0) target = $region45
  $region44: #{graphsage_forward.2} parent=0 // pred_region
    _
  $region45: #{graphsage_forward.2} parent=0 // pred_fallthru
    _

</llo_original>
